<compile_context>
chip_gen: v7x
topology: tpu7x:2x2x1
jax: 0.10.0
libtpu: 0.0.40
codegen_flags: <defaults>
</compile_context>

<pallas_src>
import functools

import jax
import jax.numpy as jnp
from jax import lax
from jax.experimental import pallas as pl
from jax.experimental.pallas import tpu as pltpu


def _downsampler_kernel(main_ref, halo_ref, w_ref, scale_ref, shift_ref, o_ref):
    """Fused conv(3x3,s2) + maxpool(2x2) + BN(affine) + ReLU for one row tile.

    main_ref : (1, TH, 4*Cin, Wo+1)  parity planes, plane rows [oh0, oh0+TH)
    halo_ref : (1, 1,  4*Cin, Wo+1)  plane row oh0+TH (halo for row-shifted taps)
    w_ref    : (4, Cconv, 4*Cin)     conv weights per (dr, dc) shift group
    scale_ref: (Cout, 1)             BN scale = gamma / sqrt(var + eps)
    shift_ref: (Cout, 1)             BN shift (conv bias folded in for conv chans)
    o_ref    : (1, Cout, TH, Wo)     NCHW output tile, W on the lane axis
    """
    th = main_ref.shape[1]
    k4 = main_ref.shape[2]
    w1 = main_ref.shape[3]
    wo = w1 - 1
    cin = k4 // 4
    cconv = w_ref.shape[1]
    cout = o_ref.shape[1]

    up = main_ref[0]                                   # (TH, 4*Cin, Wo+1), rows oh
    halo = halo_ref[0]                                 # (1,  4*Cin, Wo+1), row oh0+TH
    if th > 1:
        dn = jnp.concatenate([up[1:], halo], axis=0)   # rows oh+1
    else:
        dn = halo

    # Tap groups indexed by (row shift dr, col shift dc); weights of planes not
    # participating in a group are zero, so the full 4*Cin contraction is safe.
    taps = (up[:, :, :wo],   # (dr=0, dc=0)
            up[:, :, 1:],    # (dr=0, dc=1)
            dn[:, :, :wo],   # (dr=1, dc=0)
            dn[:, :, 1:])    # (dr=1, dc=1)

    acc = jnp.zeros((th, cconv, wo), jnp.float32)
    for g in range(4):
        w_g = jnp.broadcast_to(w_ref[g][None], (th, cconv, k4))       # bf16
        acc = acc + jnp.einsum("hck,hkw->hcw", w_g, taps[g],
                               preferred_element_type=jnp.float32)

    scale = scale_ref[...]                             # (Cout, 1) f32
    shift = shift_ref[...]

    # Conv channels: BN affine + ReLU, then channel-major for the NCHW store.
    y_conv = jnp.maximum(acc * scale[:cconv][None] + shift[:cconv][None], 0.0)
    o_ref[0, 0:cconv, :, :] = pltpu.einshape("hcw->chw", y_conv).astype(o_ref.dtype)

    # Pool channels: 2x2/s2 max-pool = max over the 4 parity planes of the
    # (dr=1, dc=1) tap, then BN affine + ReLU.
    p = taps[3]                                        # (TH, 4*Cin, Wo) bf16
    pooled = jnp.maximum(jnp.maximum(p[:, 0:cin], p[:, cin:2 * cin]),
                         jnp.maximum(p[:, 2 * cin:3 * cin], p[:, 3 * cin:4 * cin]))
    pooled = pooled.astype(jnp.float32)
    y_pool = jnp.maximum(pooled * scale[cconv:][None] + shift[cconv:][None], 0.0)
    o_ref[0, cconv:cout, :, :] = pltpu.einshape("hcw->chw", y_pool).astype(o_ref.dtype)


def _pick_row_tile(ho, cin, cout, wo, budget_bytes=6 * 1024 * 1024):
    """Largest row tile (divisor of Ho, multiple of 8 or == Ho) fitting VMEM budget."""
    k4, w1 = 4 * cin, wo + 1

    def footprint(t):
        # double-buffered (main + halo) input blocks (bf16) + output block (f32)
        return 2 * ((t + 1) * k4 * w1 * 2 + cout * t * wo * 4)

    cands = [t for t in range(1, ho + 1)
             if ho % t == 0 and (t == ho or t % 8 == 0)]
    fitting = [t for t in cands if footprint(t) <= budget_bytes]
    return max(fitting) if fitting else min(cands)


@functools.partial(jax.jit, static_argnames=("eps",))
def downsampler_block(x_nchw, conv_w, conv_b, gamma, beta, run_mean, run_var,
                      eps=1e-5):
    """Forward pass of DownsamplerBlock (ninput < noutput branch). NCHW in/out."""
    n, cin, h, w = x_nchw.shape
    cconv = conv_w.shape[0]          # = noutput - ninput
    cout = cconv + cin               # = noutput
    assert cconv > 0, "only the ninput < noutput branch is implemented"
    assert h % 2 == 0 and w % 2 == 0, "even spatial dims required"
    ho, wo = h // 2, w // 2
    k4, w1 = 4 * cin, wo + 1
    compute_dtype = jnp.bfloat16

    # ---- single wrapper-side relayout: space-to-depth parity planes (bf16) ----
    # planes[n, r, (a*2+b)*Cin + ci, c] = x[n, ci, 2*(r-1)+a, 2*(c-1)+b]
    # with the leading zero row / column implementing the conv padding.
    xr = x_nchw.astype(compute_dtype).reshape(n, cin, ho, 2, wo, 2)
    planes = jnp.transpose(xr, (0, 2, 3, 5, 1, 4)).reshape(n, ho, k4, wo)
    planes = jnp.pad(planes, ((0, 0), (1, 0), (0, 0), (1, 0)))   # (N, Ho+1, 4Cin, Wo+1)

    # ---- conv weights regrouped by (dr, dc) shift over the packed (a,b,ci) axis ----
    # kh -> (a, dr); kw -> (b, dc):  0 -> (1, 0), 1 -> (0, 1), 2 -> (1, 1)
    amap = ((1, 0), (0, 1), (1, 1))
    wg = jnp.zeros((2, 2, cconv, k4), jnp.float32)
    for kh in range(3):
        a, dr = amap[kh]
        for kw in range(3):
            b, dc = amap[kw]
            off = (a * 2 + b) * cin
            wg = wg.at[dr, dc, :, off:off + cin].set(conv_w[:, :, kh, kw])
    wg = wg.reshape(4, cconv, k4).astype(compute_dtype)

    # ---- fold BN (inference) + conv bias into a per-channel affine (f32) ----
    scale = gamma / jnp.sqrt(run_var + eps)                       # (Cout,)
    shift = beta - run_mean * scale
    shift = shift.at[:cconv].add(conv_b * scale[:cconv])
    scale2 = scale.reshape(cout, 1).astype(jnp.float32)
    shift2 = shift.reshape(cout, 1).astype(jnp.float32)

    th = _pick_row_tile(ho, cin, cout, wo)
    grid = (n, ho // th)

    flops = 2 * n * ho * wo * cconv * 9 * cin
    bytes_accessed = planes.size * 2 + n * cout * ho * wo * 4 + wg.size * 2

    out = pl.pallas_call(
        _downsampler_kernel,
        out_shape=jax.ShapeDtypeStruct((n, cout, ho, wo), x_nchw.dtype),
        grid_spec=pltpu.PrefetchScalarGridSpec(
            num_scalar_prefetch=0,
            grid=grid,
            in_specs=[
                pl.BlockSpec((1, th, k4, w1), lambda i, t: (i, t, 0, 0)),
                pl.BlockSpec((1, 1, k4, w1), lambda i, t: (i, (t + 1) * th, 0, 0)),
                pl.BlockSpec((4, cconv, k4), lambda i, t: (0, 0, 0)),
                pl.BlockSpec((cout, 1), lambda i, t: (0, 0)),
                pl.BlockSpec((cout, 1), lambda i, t: (0, 0)),
            ],
            out_specs=pl.BlockSpec((1, cout, th, wo), lambda i, t: (i, 0, t, 0)),
        ),
        compiler_params=pltpu.CompilerParams(
            dimension_semantics=("parallel", "parallel"),
            vmem_limit_bytes=32 * 1024 * 1024),
        cost_estimate=pl.CostEstimate(flops=flops, transcendentals=0,
                                      bytes_accessed=bytes_accessed),
    )(planes, planes, wg, scale2, shift2)
    return out


def _reference(x, conv_w, conv_b, gamma, beta, run_mean, run_var, eps=1e-5):
    """Pure-JAX reference mirroring the PyTorch forward (BN in eval mode)."""
    conv = lax.conv_general_dilated(
        x, conv_w, window_strides=(2, 2), padding=((1, 1), (1, 1)),
        dimension_numbers=("NCHW", "OIHW", "NCHW"))
    conv = conv + conv_b[None, :, None, None]
    pool = lax.reduce_window(x, -jnp.inf, lax.max,
                             (1, 1, 2, 2), (1, 1, 2, 2), "VALID")
    out = jnp.concatenate([conv, pool], axis=1)
    scale = gamma / jnp.sqrt(run_var + eps)
    out = (out - run_mean[None, :, None, None]) * scale[None, :, None, None] \
        + beta[None, :, None, None]
    return jax.nn.relu(out)


def _bf16_round(a):
    return a.astype(jnp.bfloat16).astype(jnp.float32)


if __name__ == "__main__":
    key = jax.random.PRNGKey(0)
    n, cin, h, w = 2, 4, 16, 16          # x: (2, 4, 16, 16), NCHW
    cout = 16                            # noutput  (ninput=4 < noutput=16)
    cconv = cout - cin                   # conv produces noutput - ninput channels

    k = jax.random.split(key, 7)
    x = jax.random.normal(k[0], (n, cin, h, w), jnp.float32)
    conv_w = 0.2 * jax.random.normal(k[1], (cconv, cin, 3, 3), jnp.float32)
    conv_b = 0.1 * jax.random.normal(k[2], (cconv,), jnp.float32)
    gamma = 1.0 + 0.1 * jax.random.normal(k[3], (cout,), jnp.float32)
    beta = 0.1 * jax.random.normal(k[4], (cout,), jnp.float32)
    run_mean = 0.1 * jax.random.normal(k[5], (cout,), jnp.float32)
    run_var = 1.0 + 0.1 * jnp.abs(jax.random.normal(k[6], (cout,), jnp.float32))

    out = downsampler_block(x, conv_w, conv_b, gamma, beta, run_mean, run_var)
    out = jax.block_until_ready(out)
    assert out.shape == (n, cout, h // 2, w // 2), out.shape

    # Tight check: reference fed the same bf16-rounded x / conv weights
    # (kernel accumulates on the MXU in f32, BN/ReLU epilogue in f32).
    ref_bf16 = _reference(_bf16_round(x), _bf16_round(conv_w), conv_b,
                          gamma, beta, run_mean, run_var)
    assert jnp.allclose(out, ref_bf16, atol=1e-4, rtol=1e-4), \
        float(jnp.max(jnp.abs(out - ref_bf16)))

    # Loose sanity check vs. the full-f32 reference (bf16 operand rounding only).
    ref_f32 = _reference(x, conv_w, conv_b, gamma, beta, run_mean, run_var)
    assert jnp.allclose(out, ref_f32, atol=5e-2, rtol=5e-2), \
        float(jnp.max(jnp.abs(out - ref_f32)))

    print("KERNEL_OK")
</pallas_src>

<mosaic_0001>
module attributes {stable_mosaic.version = 11 : i64} {
  func.func @_downsampler_kernel(%arg0: i32, %arg1: i32, %arg2: memref<1x8x16x9xbf16, #tpu.memory_space<vmem>>, %arg3: memref<1x1x16x9xbf16, #tpu.memory_space<vmem>>, %arg4: memref<4x12x16xbf16, #tpu.memory_space<vmem>>, %arg5: memref<16x1xf32, #tpu.memory_space<vmem>>, %arg6: memref<16x1xf32, #tpu.memory_space<vmem>>, %arg7: memref<1x16x8x8xf32, #tpu.memory_space<vmem>>) attributes {dimension_semantics = [#tpu.dimension_semantics<parallel>, #tpu.dimension_semantics<parallel>], iteration_bounds = array<i64: 2, 1>, scalar_prefetch = 0 : i64, scratch_operands = 0 : i64, tpu.core_type = #tpu.core_type<tc>, window_params = [{transform_indices = @transform_0, window_bounds = array<i64: 1, 8, 16, 9>}, {transform_indices = @transform_1, window_bounds = array<i64: 1, 1, 16, 9>}, {pipeline_mode = #tpu.pipeline_mode<synchronous>, transform_indices = @transform_2, window_bounds = array<i64: 4, 12, 16>}, {pipeline_mode = #tpu.pipeline_mode<synchronous>, transform_indices = @transform_3, window_bounds = array<i64: 16, 1>}, {pipeline_mode = #tpu.pipeline_mode<synchronous>, transform_indices = @transform_4, window_bounds = array<i64: 16, 1>}, {transform_indices = @transform_5, window_bounds = array<i64: 1, 16, 8, 8>}]} {
    %c0 = arith.constant 0 : index
    %c0_0 = arith.constant 0 : index
    %c0_1 = arith.constant 0 : index
    %c0_2 = arith.constant 0 : index
    %0 = vector.load %arg2[%c0, %c0_0, %c0_1, %c0_2] : memref<1x8x16x9xbf16, #tpu.memory_space<vmem>>, vector<1x8x16x9xbf16>
    %1 = vector.shape_cast %0 : vector<1x8x16x9xbf16> to vector<8x16x9xbf16>
    %c0_3 = arith.constant 0 : index
    %c0_4 = arith.constant 0 : index
    %c0_5 = arith.constant 0 : index
    %c0_6 = arith.constant 0 : index
    %2 = vector.load %arg3[%c0_3, %c0_4, %c0_5, %c0_6] : memref<1x1x16x9xbf16, #tpu.memory_space<vmem>>, vector<1x1x16x9xbf16>
    %3 = vector.shape_cast %2 : vector<1x1x16x9xbf16> to vector<1x16x9xbf16>
    %4 = vector.extract_strided_slice %1 {offsets = [1, 0, 0], sizes = [7, 16, 9], strides = [1, 1, 1]} : vector<8x16x9xbf16> to vector<7x16x9xbf16>
    %5 = tpu.concatenate %4, %3 in 0 : vector<7x16x9xbf16>, vector<1x16x9xbf16> -> vector<8x16x9xbf16>
    %6 = vector.extract_strided_slice %1 {offsets = [0, 0, 0], sizes = [8, 16, 8], strides = [1, 1, 1]} : vector<8x16x9xbf16> to vector<8x16x8xbf16>
    %7 = vector.extract_strided_slice %1 {offsets = [0, 0, 1], sizes = [8, 16, 8], strides = [1, 1, 1]} : vector<8x16x9xbf16> to vector<8x16x8xbf16>
    %8 = vector.extract_strided_slice %5 {offsets = [0, 0, 0], sizes = [8, 16, 8], strides = [1, 1, 1]} : vector<8x16x9xbf16> to vector<8x16x8xbf16>
    %9 = vector.extract_strided_slice %5 {offsets = [0, 0, 1], sizes = [8, 16, 8], strides = [1, 1, 1]} : vector<8x16x9xbf16> to vector<8x16x8xbf16>
    %cst = arith.constant 0.000000e+00 : f32
    %10 = vector.broadcast %cst : f32 to vector<8x12x8xf32>
    %c0_7 = arith.constant 0 : index
    %c0_8 = arith.constant 0 : index
    %c0_9 = arith.constant 0 : index
    %11 = vector.load %arg4[%c0_7, %c0_8, %c0_9] : memref<4x12x16xbf16, #tpu.memory_space<vmem>>, vector<1x12x16xbf16>
    %12 = vector.shape_cast %11 : vector<1x12x16xbf16> to vector<12x16xbf16>
    %13 = vector.shape_cast %12 : vector<12x16xbf16> to vector<1x12x16xbf16>
    %14 = vector.shape_cast %13 : vector<1x12x16xbf16> to vector<1x12x16xbf16>
    %15 = vector.broadcast %14 : vector<1x12x16xbf16> to vector<8x12x16xbf16>
    "tpu.trace_start"() <{level = 10 : i32, message = "hck,hkw->hcw"}> : () -> ()
    %cst_10 = arith.constant dense<0.000000e+00> : vector<8x12x8xf32>
    %16 = tpu.matmul %15, %6, %cst_10 {dimension_numbers = #tpu.dot_dimension_numbers<[2], [1], [1], [2], [0, 0, 0, 1, 1, 2], [0], [0]>} : vector<8x12x16xbf16>, vector<8x16x8xbf16>, vector<8x12x8xf32> -> vector<8x12x8xf32>
    "tpu.trace_stop"() : () -> ()
    %17 = arith.addf %10, %16 : vector<8x12x8xf32>
    %c1 = arith.constant 1 : index
    %c0_11 = arith.constant 0 : index
    %c0_12 = arith.constant 0 : index
    %18 = vector.load %arg4[%c1, %c0_11, %c0_12] : memref<4x12x16xbf16, #tpu.memory_space<vmem>>, vector<1x12x16xbf16>
    %19 = vector.shape_cast %18 : vector<1x12x16xbf16> to vector<12x16xbf16>
    %20 = vector.shape_cast %19 : vector<12x16xbf16> to vector<1x12x16xbf16>
    %21 = vector.shape_cast %20 : vector<1x12x16xbf16> to vector<1x12x16xbf16>
    %22 = vector.broadcast %21 : vector<1x12x16xbf16> to vector<8x12x16xbf16>
    "tpu.trace_start"() <{level = 10 : i32, message = "hck,hkw->hcw"}> : () -> ()
    %cst_13 = arith.constant dense<0.000000e+00> : vector<8x12x8xf32>
    %23 = tpu.matmul %22, %7, %cst_13 {dimension_numbers = #tpu.dot_dimension_numbers<[2], [1], [1], [2], [0, 0, 0, 1, 1, 2], [0], [0]>} : vector<8x12x16xbf16>, vector<8x16x8xbf16>, vector<8x12x8xf32> -> vector<8x12x8xf32>
    "tpu.trace_stop"() : () -> ()
    %24 = arith.addf %17, %23 : vector<8x12x8xf32>
    %c2 = arith.constant 2 : index
    %c0_14 = arith.constant 0 : index
    %c0_15 = arith.constant 0 : index
    %25 = vector.load %arg4[%c2, %c0_14, %c0_15] : memref<4x12x16xbf16, #tpu.memory_space<vmem>>, vector<1x12x16xbf16>
    %26 = vector.shape_cast %25 : vector<1x12x16xbf16> to vector<12x16xbf16>
    %27 = vector.shape_cast %26 : vector<12x16xbf16> to vector<1x12x16xbf16>
    %28 = vector.shape_cast %27 : vector<1x12x16xbf16> to vector<1x12x16xbf16>
    %29 = vector.broadcast %28 : vector<1x12x16xbf16> to vector<8x12x16xbf16>
    "tpu.trace_start"() <{level = 10 : i32, message = "hck,hkw->hcw"}> : () -> ()
    %cst_16 = arith.constant dense<0.000000e+00> : vector<8x12x8xf32>
    %30 = tpu.matmul %29, %8, %cst_16 {dimension_numbers = #tpu.dot_dimension_numbers<[2], [1], [1], [2], [0, 0, 0, 1, 1, 2], [0], [0]>} : vector<8x12x16xbf16>, vector<8x16x8xbf16>, vector<8x12x8xf32> -> vector<8x12x8xf32>
    "tpu.trace_stop"() : () -> ()
    %31 = arith.addf %24, %30 : vector<8x12x8xf32>
    %c3 = arith.constant 3 : index
    %c0_17 = arith.constant 0 : index
    %c0_18 = arith.constant 0 : index
    %32 = vector.load %arg4[%c3, %c0_17, %c0_18] : memref<4x12x16xbf16, #tpu.memory_space<vmem>>, vector<1x12x16xbf16>
    %33 = vector.shape_cast %32 : vector<1x12x16xbf16> to vector<12x16xbf16>
    %34 = vector.shape_cast %33 : vector<12x16xbf16> to vector<1x12x16xbf16>
    %35 = vector.shape_cast %34 : vector<1x12x16xbf16> to vector<1x12x16xbf16>
    %36 = vector.broadcast %35 : vector<1x12x16xbf16> to vector<8x12x16xbf16>
    "tpu.trace_start"() <{level = 10 : i32, message = "hck,hkw->hcw"}> : () -> ()
    %cst_19 = arith.constant dense<0.000000e+00> : vector<8x12x8xf32>
    %37 = tpu.matmul %36, %9, %cst_19 {dimension_numbers = #tpu.dot_dimension_numbers<[2], [1], [1], [2], [0, 0, 0, 1, 1, 2], [0], [0]>} : vector<8x12x16xbf16>, vector<8x16x8xbf16>, vector<8x12x8xf32> -> vector<8x12x8xf32>
    "tpu.trace_stop"() : () -> ()
    %38 = arith.addf %31, %37 : vector<8x12x8xf32>
    %c0_20 = arith.constant 0 : index
    %c0_21 = arith.constant 0 : index
    %39 = vector.load %arg5[%c0_20, %c0_21] : memref<16x1xf32, #tpu.memory_space<vmem>>, vector<16x1xf32>
    %c0_22 = arith.constant 0 : index
    %c0_23 = arith.constant 0 : index
    %40 = vector.load %arg6[%c0_22, %c0_23] : memref<16x1xf32, #tpu.memory_space<vmem>>, vector<16x1xf32>
    %41 = vector.extract_strided_slice %39 {offsets = [0, 0], sizes = [12, 1], strides = [1, 1]} : vector<16x1xf32> to vector<12x1xf32>
    %42 = vector.shape_cast %41 : vector<12x1xf32> to vector<1x12x1xf32>
    %43 = vector.broadcast %42 : vector<1x12x1xf32> to vector<8x12x8xf32>
    %44 = arith.mulf %38, %43 : vector<8x12x8xf32>
    %45 = vector.extract_strided_slice %40 {offsets = [0, 0], sizes = [12, 1], strides = [1, 1]} : vector<16x1xf32> to vector<12x1xf32>
    %46 = vector.shape_cast %45 : vector<12x1xf32> to vector<1x12x1xf32>
    %47 = vector.broadcast %46 : vector<1x12x1xf32> to vector<8x12x8xf32>
    %48 = arith.addf %44, %47 : vector<8x12x8xf32>
    %cst_24 = arith.constant 0.000000e+00 : f32
    %49 = vector.broadcast %cst_24 : f32 to vector<8x12x8xf32>
    %50 = arith.maximumf %48, %49 : vector<8x12x8xf32>
    %51 = tpu.transpose %50, [1, 0, 2] : vector<8x12x8xf32> -> vector<12x8x8xf32>
    %c0_25 = arith.constant 0 : index
    %c0_26 = arith.constant 0 : index
    %c0_27 = arith.constant 0 : index
    %c0_28 = arith.constant 0 : index
    %52 = vector.load %arg7[%c0_25, %c0_26, %c0_27, %c0_28] : memref<1x16x8x8xf32, #tpu.memory_space<vmem>>, vector<1x12x8x8xf32>
    %53 = vector.shape_cast %52 : vector<1x12x8x8xf32> to vector<12x8x8xf32>
    %54 = vector.shape_cast %51 : vector<12x8x8xf32> to vector<1x12x8x8xf32>
    tpu.vector_store %arg7[%c0_25, %c0_26, %c0_27, %c0_28], %54 {strides = array<i32>} : memref<1x16x8x8xf32, #tpu.memory_space<vmem>>, vector<1x12x8x8xf32>,
    %55 = vector.extract_strided_slice %9 {offsets = [0, 0, 0], sizes = [8, 4, 8], strides = [1, 1, 1]} : vector<8x16x8xbf16> to vector<8x4x8xbf16>
    %56 = vector.extract_strided_slice %9 {offsets = [0, 4, 0], sizes = [8, 4, 8], strides = [1, 1, 1]} : vector<8x16x8xbf16> to vector<8x4x8xbf16>
    %57 = arith.maximumf %55, %56 : vector<8x4x8xbf16>
    %58 = vector.extract_strided_slice %9 {offsets = [0, 8, 0], sizes = [8, 4, 8], strides = [1, 1, 1]} : vector<8x16x8xbf16> to vector<8x4x8xbf16>
    %59 = vector.extract_strided_slice %9 {offsets = [0, 12, 0], sizes = [8, 4, 8], strides = [1, 1, 1]} : vector<8x16x8xbf16> to vector<8x4x8xbf16>
    %60 = arith.maximumf %58, %59 : vector<8x4x8xbf16>
    %61 = arith.maximumf %57, %60 : vector<8x4x8xbf16>
    %62 = arith.extf %61 : vector<8x4x8xbf16> to vector<8x4x8xf32>
    %63 = vector.extract_strided_slice %39 {offsets = [12, 0], sizes = [4, 1], strides = [1, 1]} : vector<16x1xf32> to vector<4x1xf32>
    %64 = vector.shape_cast %63 : vector<4x1xf32> to vector<1x4x1xf32>
    %65 = vector.broadcast %64 : vector<1x4x1xf32> to vector<8x4x8xf32>
    %66 = arith.mulf %62, %65 : vector<8x4x8xf32>
    %67 = vector.extract_strided_slice %40 {offsets = [12, 0], sizes = [4, 1], strides = [1, 1]} : vector<16x1xf32> to vector<4x1xf32>
    %68 = vector.shape_cast %67 : vector<4x1xf32> to vector<1x4x1xf32>
    %69 = vector.broadcast %68 : vector<1x4x1xf32> to vector<8x4x8xf32>
    %70 = arith.addf %66, %69 : vector<8x4x8xf32>
    %cst_29 = arith.constant 0.000000e+00 : f32
    %71 = vector.broadcast %cst_29 : f32 to vector<8x4x8xf32>
    %72 = arith.maximumf %70, %71 : vector<8x4x8xf32>
    %73 = tpu.transpose %72, [1, 0, 2] : vector<8x4x8xf32> -> vector<4x8x8xf32>
    %c0_30 = arith.constant 0 : index
    %c12 = arith.constant 12 : index
    %c0_31 = arith.constant 0 : index
    %c0_32 = arith.constant 0 : index
    %74 = vector.load %arg7[%c0_30, %c12, %c0_31, %c0_32] : memref<1x16x8x8xf32, #tpu.memory_space<vmem>>, vector<1x4x8x8xf32>
    %75 = vector.shape_cast %74 : vector<1x4x8x8xf32> to vector<4x8x8xf32>
    %76 = vector.shape_cast %73 : vector<4x8x8xf32> to vector<1x4x8x8xf32>
    tpu.vector_store %arg7[%c0_30, %c12, %c0_31, %c0_32], %76 {strides = array<i32>} : memref<1x16x8x8xf32, #tpu.memory_space<vmem>>, vector<1x4x8x8xf32>,
    return
  }
  func.func @transform_0(%arg0: i32, %arg1: i32) -> (i32, i32, i32, i32) {
    %c0_i32 = arith.constant 0 : i32
    %c0_i32_0 = arith.constant 0 : i32
    %c0_i32_1 = arith.constant 0 : i32
    return %arg0, %arg1, %c0_i32, %c0_i32_0 : i32, i32, i32, i32
  }
  func.func @transform_1(%arg0: i32, %arg1: i32) -> (i32, i32, i32, i32) {
    %c1_i32 = arith.constant 1 : i32
    %0 = arith.addi %arg1, %c1_i32 : i32
    %c8_i32 = arith.constant 8 : i32
    %1 = arith.muli %0, %c8_i32 : i32
    %c0_i32 = arith.constant 0 : i32
    %c0_i32_0 = arith.constant 0 : i32
    %c0_i32_1 = arith.constant 0 : i32
    return %arg0, %1, %c0_i32, %c0_i32_0 : i32, i32, i32, i32
  }
  func.func @transform_2(%arg0: i32, %arg1: i32) -> (i32, i32, i32) {
    %c0_i32 = arith.constant 0 : i32
    %c0_i32_0 = arith.constant 0 : i32
    %c0_i32_1 = arith.constant 0 : i32
    %c0_i32_2 = arith.constant 0 : i32
    return %c0_i32, %c0_i32_0, %c0_i32_1 : i32, i32, i32
  }
  func.func @transform_3(%arg0: i32, %arg1: i32) -> (i32, i32) {
    %c0_i32 = arith.constant 0 : i32
    %c0_i32_0 = arith.constant 0 : i32
    %c0_i32_1 = arith.constant 0 : i32
    return %c0_i32, %c0_i32_0 : i32, i32
  }
  func.func @transform_4(%arg0: i32, %arg1: i32) -> (i32, i32) {
    %c0_i32 = arith.constant 0 : i32
    %c0_i32_0 = arith.constant 0 : i32
    %c0_i32_1 = arith.constant 0 : i32
    return %c0_i32, %c0_i32_0 : i32, i32
  }
  func.func @transform_5(%arg0: i32, %arg1: i32) -> (i32, i32, i32, i32) {
    %c0_i32 = arith.constant 0 : i32
    %c0_i32_0 = arith.constant 0 : i32
    %c0_i32_1 = arith.constant 0 : i32
    return %arg0, %c0_i32, %arg1, %c0_i32_0 : i32, i32, i32, i32
  }
}

</mosaic_0001>

<llo_original>
// kernel: downsampler_block.1
$region0: #{downsampler_block.1}
  #allocation0 [shape = 'u32[]', space=smem, size = 0x4, offset = 0x4, fixed_abs, tag = 'smem constant byte address 0x4 - core index']
  #allocation1 [shape = 'u32[144,128]{1,0:T(1,128)}', space=vmem, size = 0x12000, scoped, tag = 'internal scratch']
  %s0 = inlined_call_operand.vmem [shape: bf16[2,9,16,9], index: 0, kind: input, shape index: {}, may-alias: {0,1}]
  %s1 = inlined_call_operand.vmem [shape: bf16[2,9,16,9], index: 1, kind: input, shape index: {}, may-alias: {0,1}]
  %s2 = inlined_call_operand.vmem [shape: bf16[4,12,16], index: 2, kind: input, shape index: {}]
  %s3 = inlined_call_operand.vmem [shape: f32[16,1], index: 3, kind: input, shape index: {}]
  %s4 = inlined_call_operand.vmem [shape: f32[16,1], index: 4, kind: input, shape index: {}]
  %s5 = inlined_call_operand.vmem [shape: f32[2,16,8,8], index: 5, kind: output, shape index: {}]
  %s6 = sld [smem:[#allocation0]]
  $region53: #{downsampler_block.1} parent=0
    _
  %s8 = ssub.s32 1, %s6
  %s9 = scalar_select 0, %s8, %s6
  loop: start=0, step=1, limit=4
  $region2: #{downsampler_block.1} parent=0 // loop_pre_header
    _
  $region3: #{downsampler_block.1} parent=0 // loop_header
    %s11 = sphi 0, %s15
    %p12 = scmp.ge.s32.totalorder %s11, 4
    %s18 = sphi 0, %s30
    %s19 = sphi 0, %s26
    %s20 = sphi 0, %s18
    %s21 = sphi 0, %s19
    %s22 = sphi 0, %s20
    %s23 = sphi 0, %s21
    %s35 = sphi 0, %s37
    %s38 = sphi 0, %s35
    %s39 = sphi 0, %s38
    %s55 = sphi 0, %s39
    %s67 = sphi 0, %s69
    %s70 = sphi 0, %s67
    %s71 = sphi 0, %s70
    %s87 = sphi 0, %s71
    %s91 = sphi 0, %s91
    %s93 = sphi 0, %s91
    %s94 = sphi 0, %s93
    %s108 = sphi 0, %s94
    %s112 = sphi 0, %s112
    %s114 = sphi 0, %s112
    %s115 = sphi 0, %s114
    %s129 = sphi 0, %s115
    %s133 = sphi 0, %s133
    %s135 = sphi 0, %s133
    %s136 = sphi 0, %s135
    %s150 = sphi 0, %s136
    %s158 = sphi 0, %s160
    %s161 = sphi 0, %s158
    %s162 = sphi 0, %s161
    %s178 = sphi 0, %s162
  $region4: #{downsampler_block.1} parent=0 // loop_header_branch
    %14 = sbr.rel (%p12) target = $region8
  $region5: #{downsampler_block.1} parent=0 // loop_body
    %s16 = ssub.s32 %s11, 1
    %s17 = ssub.s32 %s11, 2
    %s24 = sadd.s32 1, %s19
    %p25 = scmp.ge.s32.totalorder %s24, 1
    %s26 = scalar_select %p25, 0, %s24
    %s27 = sadd.s32 1, %s18
    %s28 = scalar_select %p25, %s27, %s18
    %p29 = scmp.ge.s32.totalorder %s28, 2
    %s30 = scalar_select %p29, 0, %s28
    %s31 = ssub.s32 %s18, %s30
    %s32 = ssub.s32 %s19, %s26
    %s33 = sor.u32 %s31, %s32
    %p34 = scmp.eq.s32.totalorder %s33, 0
    %s36 = sadd.s32 %s35, 1
    %s37 = scalar_select %p34, %s35, %s36
    %p40 = pneg %p34
    %p41 = scmp.eq.s32.totalorder %s11, 1
    %p42 = por %p40, %p41
    %p43 = scmp.ne.s32.totalorder %s35, %s38
    %p44 = scmp.eq.s32.totalorder %s11, 0
    %p45 = por %p43, %p44
    %p46 = scmp.ne.s32.totalorder %s35, %s38
    %p47 = scmp.eq.s32.totalorder %s16, 1
    %p48 = por %p46, %p47
    %p49 = scmp.ne.s32.totalorder %s38, %s39
    %p50 = scmp.eq.s32.totalorder %s16, 0
    %p51 = por %p49, %p50
    %p52 = scmp.ne.s32.totalorder %s38, %s39
    %p53 = scmp.eq.s32.totalorder %s17, 1
    %p54 = por %p52, %p53
    %p56 = scmp.ne.s32.totalorder %s39, %s55
    %p57 = scmp.eq.s32.totalorder %s17, 0
    %p58 = por %p56, %p57
    %s59 = sadd.s32 %s19, 1
    %s60 = smul.u32 %s59, 8
    %s61 = sadd.s32 %s26, 1
    %s62 = smul.u32 %s61, 8
    %s63 = ssub.s32 %s18, %s30
    %s64 = ssub.s32 %s60, %s62
    %s65 = sor.u32 %s63, %s64
    %p66 = scmp.eq.s32.totalorder %s65, 0
    %s68 = sadd.s32 %s67, 1
    %s69 = scalar_select %p66, %s67, %s68
    %p72 = pneg %p66
    %p73 = scmp.eq.s32.totalorder %s11, 1
    %p74 = por %p72, %p73
    %p75 = scmp.ne.s32.totalorder %s67, %s70
    %p76 = scmp.eq.s32.totalorder %s11, 0
    %p77 = por %p75, %p76
    %p78 = scmp.ne.s32.totalorder %s67, %s70
    %p79 = scmp.eq.s32.totalorder %s16, 1
    %p80 = por %p78, %p79
    %p81 = scmp.ne.s32.totalorder %s70, %s71
    %p82 = scmp.eq.s32.totalorder %s16, 0
    %p83 = por %p81, %p82
    %p84 = scmp.ne.s32.totalorder %s70, %s71
    %p85 = scmp.eq.s32.totalorder %s17, 1
    %p86 = por %p84, %p85
    %p88 = scmp.ne.s32.totalorder %s71, %s87
    %p89 = scmp.eq.s32.totalorder %s17, 0
    %p90 = por %p88, %p89
    %s92 = sadd.s32 %s91, 1
    %p95 = scmp.eq.s32.totalorder %s11, 1
    %p96 = scmp.ne.s32.totalorder %s91, %s93
    %p97 = scmp.eq.s32.totalorder %s11, 0
    %p98 = por %p96, %p97
    %p99 = scmp.ne.s32.totalorder %s91, %s93
    %p100 = scmp.eq.s32.totalorder %s16, 1
    %p101 = por %p99, %p100
    %p102 = scmp.ne.s32.totalorder %s93, %s94
    %p103 = scmp.eq.s32.totalorder %s16, 0
    %p104 = por %p102, %p103
    %p105 = scmp.ne.s32.totalorder %s93, %s94
    %p106 = scmp.eq.s32.totalorder %s17, 1
    %p107 = por %p105, %p106
    %p109 = scmp.ne.s32.totalorder %s94, %s108
    %p110 = scmp.eq.s32.totalorder %s17, 0
    %p111 = por %p109, %p110
    %s113 = sadd.s32 %s112, 1
    %p116 = scmp.eq.s32.totalorder %s11, 1
    %p117 = scmp.ne.s32.totalorder %s112, %s114
    %p118 = scmp.eq.s32.totalorder %s11, 0
    %p119 = por %p117, %p118
    %p120 = scmp.ne.s32.totalorder %s112, %s114
    %p121 = scmp.eq.s32.totalorder %s16, 1
    %p122 = por %p120, %p121
    %p123 = scmp.ne.s32.totalorder %s114, %s115
    %p124 = scmp.eq.s32.totalorder %s16, 0
    %p125 = por %p123, %p124
    %p126 = scmp.ne.s32.totalorder %s114, %s115
    %p127 = scmp.eq.s32.totalorder %s17, 1
    %p128 = por %p126, %p127
    %p130 = scmp.ne.s32.totalorder %s115, %s129
    %p131 = scmp.eq.s32.totalorder %s17, 0
    %p132 = por %p130, %p131
    %s134 = sadd.s32 %s133, 1
    %p137 = scmp.eq.s32.totalorder %s11, 1
    %p138 = scmp.ne.s32.totalorder %s133, %s135
    %p139 = scmp.eq.s32.totalorder %s11, 0
    %p140 = por %p138, %p139
    %p141 = scmp.ne.s32.totalorder %s133, %s135
    %p142 = scmp.eq.s32.totalorder %s16, 1
    %p143 = por %p141, %p142
    %p144 = scmp.ne.s32.totalorder %s135, %s136
    %p145 = scmp.eq.s32.totalorder %s16, 0
    %p146 = por %p144, %p145
    %p147 = scmp.ne.s32.totalorder %s135, %s136
    %p148 = scmp.eq.s32.totalorder %s17, 1
    %p149 = por %p147, %p148
    %p151 = scmp.ne.s32.totalorder %s136, %s150
    %p152 = scmp.eq.s32.totalorder %s17, 0
    %p153 = por %p151, %p152
    %s154 = ssub.s32 %s18, %s30
    %s155 = ssub.s32 %s19, %s26
    %s156 = sor.u32 %s154, %s155
    %p157 = scmp.eq.s32.totalorder %s156, 0
    %s159 = sadd.s32 %s158, 1
    %s160 = scalar_select %p157, %s158, %s159
    %p163 = pneg %p157
    %p164 = scmp.eq.s32.totalorder %s11, 1
    %p165 = por %p163, %p164
    %p166 = scmp.ne.s32.totalorder %s158, %s161
    %p167 = scmp.eq.s32.totalorder %s11, 0
    %p168 = por %p166, %p167
    %p169 = scmp.ne.s32.totalorder %s158, %s161
    %p170 = scmp.eq.s32.totalorder %s16, 1
    %p171 = por %p169, %p170
    %p172 = scmp.ne.s32.totalorder %s161, %s162
    %p173 = scmp.eq.s32.totalorder %s16, 0
    %p174 = por %p172, %p173
    %p175 = scmp.ne.s32.totalorder %s161, %s162
    %p176 = scmp.eq.s32.totalorder %s17, 1
    %p177 = por %p175, %p176
    %p179 = scmp.ne.s32.totalorder %s162, %s178
    %p180 = scmp.eq.s32.totalorder %s17, 0
    %p181 = por %p179, %p180
    %p182 = scmp.le.s32.totalorder 1, %s11
    %p183 = scmp.lt.s32.totalorder %s11, 3
    %p184 = pnand %p182, %p183
    %p185 = pneg %p184
    // Predicated region
    $region9: #{downsampler_block.1} parent=5 // pred_check
      _
    $region10: #{downsampler_block.1} parent=5 // pred_check_branch
      %187 = sbr.rel (%p184) target = $region12
    $region11: #{downsampler_block.1} parent=5 // pred_region
      %s188 = ssub.s32 %s11, 1
      // Predicated region
      $region13: #{downsampler_block.1} parent=11 // pred_check
        %p189 = pneg %p104
      $region14: #{downsampler_block.1} parent=11 // pred_check_branch
        %191 = sbr.rel (%p189) target = $region16
      $region15: #{downsampler_block.1} parent=11 // pred_region
        _
      $region16: #{downsampler_block.1} parent=11 // pred_fallthru
        _
      // Predicated region
      $region17: #{downsampler_block.1} parent=11 // pred_check
        %p192 = pneg %p125
      $region18: #{downsampler_block.1} parent=11 // pred_check_branch
        %194 = sbr.rel (%p192) target = $region20
      $region19: #{downsampler_block.1} parent=11 // pred_region
        _
      $region20: #{downsampler_block.1} parent=11 // pred_fallthru
        _
      // Predicated region
      $region21: #{downsampler_block.1} parent=11 // pred_check
        %p195 = pneg %p146
      $region22: #{downsampler_block.1} parent=11 // pred_check_branch
        %197 = sbr.rel (%p195) target = $region24
      $region23: #{downsampler_block.1} parent=11 // pred_region
        _
      $region24: #{downsampler_block.1} parent=11 // pred_fallthru
        _
    $region12: #{downsampler_block.1} parent=5 // pred_fallthru
      _
    %p198 = scmp.lt.s32.totalorder %s11, 2
    // Predicated region
    $region25: #{downsampler_block.1} parent=5 // pred_check
      %p199 = pneg %p198
    $region26: #{downsampler_block.1} parent=5 // pred_check_branch
      %201 = sbr.rel (%p199) target = $region28
    $region27: #{downsampler_block.1} parent=5 // pred_region
      // Predicated region
      $region29: #{downsampler_block.1} parent=27 // pred_check
        %p202 = pneg %p45
      $region30: #{downsampler_block.1} parent=27 // pred_check_branch
        %204 = sbr.rel (%p202) target = $region32
      $region31: #{downsampler_block.1} parent=27 // pred_region
        %s205 = smul.u32 8, %s19
        %s206 = ssub.s32 9, %s205
        %p207 = scmp.lt.s32.totalorder %s206, 8
        %s208 = scalar_select %p207, %s206, 8
        %s209 = smul.u32 64, %s208
        %s210 = smul.u32 %s209, 2
        %p211 = scmp.lt.s32.totalorder %s18, 1
        %s212 = scalar_select %p211, %s18, 1
        %p213 = scmp.lt.s32.totalorder %s205, 8
        %s214 = scalar_select %p213, %s205, 8
        %s215 = smul.addr %s214, 2
        %s216 = smul.addr %s212, 18
        %s217 = sadd.s32 %s215, %s216
        %s218 = smul.addr %s217, 4
        %s219 = scalar_lea.vmem %s0, %s218
        %s220 = smul.u32 8, %s19
        %s221 = ssub.s32 9, %s220
        %p222 = scmp.lt.s32.totalorder %s221, 8
        %s223 = scalar_select %p222, %s221, 8
        %s224 = smul.u32 64, %s223
        %s225 = smul.u32 %s224, 2
      $region32: #{downsampler_block.1} parent=27 // pred_fallthru
        _
      // Predicated region
      $region33: #{downsampler_block.1} parent=27 // pred_check
        %p226 = pneg %p77
      $region34: #{downsampler_block.1} parent=27 // pred_check_branch
        %228 = sbr.rel (%p226) target = $region36
      $region35: #{downsampler_block.1} parent=27 // pred_region
        %s229 = sadd.s32 %s19, 1
        %s230 = smul.u32 %s229, 8
        %p231 = scmp.lt.s32.totalorder %s18, 1
        %s232 = scalar_select %p231, %s18, 1
        %p233 = scmp.lt.s32.totalorder %s230, 8
        %s234 = scalar_select %p233, %s230, 8
        %s235 = smul.addr %s234, 2
        %s236 = smul.addr %s232, 18
        %s237 = sadd.s32 %s235, %s236
        %s238 = smul.addr %s237, 4
        %s239 = scalar_lea.vmem %s1, %s238
        %s240 = sadd.s32 %s19, 1
        %s241 = smul.u32 %s240, 8
      $region36: #{downsampler_block.1} parent=27 // pred_fallthru
        _
    $region28: #{downsampler_block.1} parent=5 // pred_fallthru
      _
    %p242 = scmp.le.s32.totalorder 1, %s11
    %p243 = scmp.lt.s32.totalorder %s11, 3
    %p244 = pnand %p242, %p243
    %p245 = pneg %p244
    // Predicated region
    $region37: #{downsampler_block.1} parent=5 // pred_check
      _
    $region38: #{downsampler_block.1} parent=5 // pred_check_branch
      %247 = sbr.rel (%p244) target = $region40
    $region39: #{downsampler_block.1} parent=5 // pred_region
      %s248 = ssub.s32 %s11, 1
      %s249 = smul.u32 8, %s21
      %s250 = ssub.s32 9, %s249
      %p251 = scmp.lt.s32.totalorder %s250, 8
      %s252 = scalar_select %p251, %s250, 8
      %s253 = smul.u32 64, %s252
      %s254 = smul.u32 %s253, 2
      %p255 = scmp.lt.s32.totalorder %s20, 1
      %s256 = scalar_select %p255, %s20, 1
      %p257 = scmp.lt.s32.totalorder %s249, 8
      %s258 = scalar_select %p257, %s249, 8
      %s259 = smul.addr %s258, 2
      %s260 = smul.addr %s256, 18
      %s261 = sadd.s32 %s259, %s260
      %s262 = smul.addr %s261, 4
      %s263 = scalar_lea.vmem %s0, %s262
      %p264 = pneg %p51
      %p265 = pneg %p48
      %s266 = sadd.s32 %s21, 1
      %s267 = smul.u32 %s266, 8
      %p268 = scmp.lt.s32.totalorder %s20, 1
      %s269 = scalar_select %p268, %s20, 1
      %p270 = scmp.lt.s32.totalorder %s267, 8
      %s271 = scalar_select %p270, %s267, 8
      %s272 = smul.addr %s271, 2
      %s273 = smul.addr %s269, 18
      %s274 = sadd.s32 %s272, %s273
      %s275 = smul.addr %s274, 4
      %s276 = scalar_lea.vmem %s1, %s275
      %p277 = pneg %p83
      %p278 = pneg %p80
      %p279 = pneg %p104
      %p280 = pneg %p101
      %p281 = pneg %p125
      %p282 = pneg %p122
      %p283 = pneg %p146
      %p284 = pneg %p143
      %p285 = pneg %p174
      %p286 = pneg %p171
      %p287 = scmp.lt.s32.totalorder %s20, 1
      %s288 = scalar_select %p287, %s20, 1
      %p289 = scmp.lt.s32.totalorder %s21, 0
      %s290 = scalar_select %p289, %s21, 0
      %s291 = smul.addr %s288, 16
      %s292 = sadd.s32 %s290, %s291
      %s293 = smul.addr %s292, 8
      %s294 = scalar_lea.vmem %s5, %s293
      %s295 = smul.u32 8, %s21
      %s296 = ssub.s32 9, %s295
      %p297 = scmp.lt.s32.totalorder %s296, 8
      %s298 = scalar_select %p297, %s296, 8
      %s299 = smul.u32 64, %s298
      %s300 = smul.u32 %s299, 2
      %p301 = scmp.lt.s32.totalorder %s20, 1
      %s302 = scalar_select %p301, %s20, 1
      %p303 = scmp.lt.s32.totalorder %s295, 8
      %s304 = scalar_select %p303, %s295, 8
      %s305 = smul.addr %s304, 2
      %s306 = smul.addr %s302, 18
      %s307 = sadd.s32 %s305, %s306
      %s308 = smul.addr %s307, 4
      %s309 = scalar_lea.vmem %s0, %s308
      %s310 = smul.u32 8, %s21
      %s311 = ssub.s32 9, %s310
      %p312 = scmp.lt.s32.totalorder %s311, 8
      %s313 = scalar_select %p312, %s311, 8
      %s314 = smul.u32 64, %s313
      %s315 = smul.u32 %s314, 2
      %s316 = sadd.s32 %s21, 1
      %s317 = smul.u32 %s316, 8
      %p318 = scmp.lt.s32.totalorder %s20, 1
      %s319 = scalar_select %p318, %s20, 1
      %p320 = scmp.lt.s32.totalorder %s317, 8
      %s321 = scalar_select %p320, %s317, 8
      %s322 = smul.addr %s321, 2
      %s323 = smul.addr %s319, 18
      %s324 = sadd.s32 %s322, %s323
      %s325 = smul.addr %s324, 4
      %s326 = scalar_lea.vmem %s1, %s325
      %s327 = sadd.s32 %s21, 1
      %s328 = smul.u32 %s327, 8
      %p329 = scmp.lt.s32.totalorder %s20, 1
      %s330 = scalar_select %p329, %s20, 1
      %p331 = scmp.lt.s32.totalorder %s21, 0
      %s332 = scalar_select %p331, %s21, 0
      %s333 = smul.addr %s330, 16
      %s334 = sadd.s32 %s332, %s333
      %s335 = smul.addr %s334, 8
      %s336 = scalar_lea.vmem %s5, %s335
      %v338 = vld [vmem:[%s309] sm:$0xf]
      %v339 = vld [vmem:[%s309 + $0x4] sm:$0xf]
      %v340 = vld [vmem:[%s309 + $0x8] sm:$0xf]
      %v341 = vld [vmem:[%s309 + $0xc] sm:$0xf]
      %v342 = vld [vmem:[%s309 + $0x10] sm:$0xf]
      %v343 = vld [vmem:[%s309 + $0x14] sm:$0xf]
      %v344 = vld [vmem:[%s309 + $0x18] sm:$0xf]
      %v345 = vld [vmem:[%s309 + $0x1c] sm:$0xf]
      %v346 = vld [vmem:[%s309 + $0x20] sm:$0xf]
      %v347 = vld [vmem:[%s309 + $0x24] sm:$0xf]
      %v348 = vld [vmem:[%s309 + $0x28] sm:$0xf]
      %v349 = vld [vmem:[%s309 + $0x2c] sm:$0xf]
      %v350 = vld [vmem:[%s309 + $0x30] sm:$0xf]
      %v351 = vld [vmem:[%s309 + $0x34] sm:$0xf]
      %v352 = vld [vmem:[%s309 + $0x38] sm:$0xf]
      %v353 = vld [vmem:[%s309 + $0x3c] sm:$0xf]
      %v354 = vld [vmem:[%s326] sm:$0xf]
      %v355 = vld [vmem:[%s326 + $0x4] sm:$0xf]
      %v356 = vld [vmem:[%s2] sm:$0xf]
      %v357 = vld [vmem:[%s2 + $0x4] sm:$0x3]
      %s358 = scalar_lea.vmem %s2, 8
      %v359 = vld [vmem:[%s358] sm:$0xf]
      %v360 = vld [vmem:[%s358 + $0x4] sm:$0x3]
      %v363 = vunpack.c.l.b16 %v359
      %v364 = vunpack.c.l.b16 %v360
      %v365 = vpack.c.b16 %v364, %v363
      %v368 = vunpack.c.l.b16 %v338
      %v369 = vunpack.c.l.b16 %v339
      %v370 = vpack.c.b16 %v369, %v368
      %371 = vrot.lane.b32.xlu0 %v370, 127
      %v372 = vpop.permute.xlu0 %371
      %vm374 = vcmask 130048
      %v376 = vsel %vm374, %v365, 0
      %378 = vmatprep.subr.bf16.mxu0 0
      %379 = vmatpush1.bf16.msra.mxu0 %v372
      %380 = vmatprep.subr.bf16.mxu0 0
      %381 = vmatpush1.bf16.msra.mxu0 0
      %382 = vmatprep.subr.bf16.mxu0 0
      %383 = vmatpush1.bf16.msra.mxu0 0
      %384 = vmatprep.subr.bf16.mxu0 0
      %385 = vmatpush1.bf16.msra.mxu0 0
      %386 = vmatprep.subr.bf16.mxu0 0
      %387 = vmatpush1.bf16.msra.mxu0 0
      %388 = vmatprep.subr.bf16.mxu0 0
      %389 = vmatpush1.bf16.msra.mxu0 0
      %390 = vmatprep.subr.bf16.mxu0 0
      %391 = vmatpush1.bf16.msra.mxu0 0
      %392 = vmatprep.subr.bf16.mxu0 0
      %393 = vmatpush1.bf16.msra.mxu0 0
      %394 = vmatprep.subr.bf16.mxu0 0
      %395 = vmatpush1.bf16.msra.mxu0 0
      %396 = vmatprep.subr.bf16.mxu0 0
      %397 = vmatpush1.bf16.msra.mxu0 0
      %398 = vmatprep.subr.bf16.mxu0 0
      %399 = vmatpush1.bf16.msra.mxu0 0
      %400 = vmatprep.subr.bf16.mxu0 0
      %401 = vmatpush1.bf16.msra.mxu0 0
      %402 = vmatprep.subr.bf16.mxu0 0
      %403 = vmatpush1.bf16.msra.mxu0 0
      %404 = vmatprep.subr.bf16.mxu0 0
      %405 = vmatpush1.bf16.msra.mxu0 0
      %406 = vmatprep.subr.bf16.mxu0 0
      %407 = vmatpush1.bf16.msra.mxu0 0
      %408 = vmatprep.subr.bf16.mxu0 0
      %409 = vmatpush1.bf16.msra.mxu0 0
      %410 = vmatprep.mubr.bf16.mxu0 0
      %411 = vmatmul.mubr.bf16.gmra.mrb[0].mxu0 %v376
      %v412 = vpop.f32.mrb[0].mxu0
      %v413 = vadd.f32 0.0, %v412
      %v414 = vpop.f32.mrb[0].mxu0
      %v415 = vpop.f32.mrb[0].mxu0
      %v416 = vadd.f32 0.0, %v415
      %v417 = vpop.f32.mrb[0].mxu0
      %418 = vdwg.mxu0
      %v421 = vunpack.c.l.b16 %v340
      %v422 = vunpack.c.l.b16 %v341
      %v423 = vpack.c.b16 %v422, %v421
      %424 = vrot.lane.b32.xlu0 %v423, 127
      %v425 = vpop.permute.xlu0 %424
      %427 = vmatprep.subr.bf16.mxu0 0
      %428 = vmatpush1.bf16.msra.mxu0 %v425
      %429 = vmatprep.subr.bf16.mxu0 0
      %430 = vmatpush1.bf16.msra.mxu0 0
      %431 = vmatprep.subr.bf16.mxu0 0
      %432 = vmatpush1.bf16.msra.mxu0 0
      %433 = vmatprep.subr.bf16.mxu0 0
      %434 = vmatpush1.bf16.msra.mxu0 0
      %435 = vmatprep.subr.bf16.mxu0 0
      %436 = vmatpush1.bf16.msra.mxu0 0
      %437 = vmatprep.subr.bf16.mxu0 0
      %438 = vmatpush1.bf16.msra.mxu0 0
      %439 = vmatprep.subr.bf16.mxu0 0
      %440 = vmatpush1.bf16.msra.mxu0 0
      %441 = vmatprep.subr.bf16.mxu0 0
      %442 = vmatpush1.bf16.msra.mxu0 0
      %443 = vmatprep.subr.bf16.mxu0 0
      %444 = vmatpush1.bf16.msra.mxu0 0
      %445 = vmatprep.subr.bf16.mxu0 0
      %446 = vmatpush1.bf16.msra.mxu0 0
      %447 = vmatprep.subr.bf16.mxu0 0
      %448 = vmatpush1.bf16.msra.mxu0 0
      %449 = vmatprep.subr.bf16.mxu0 0
      %450 = vmatpush1.bf16.msra.mxu0 0
      %451 = vmatprep.subr.bf16.mxu0 0
      %452 = vmatpush1.bf16.msra.mxu0 0
      %453 = vmatprep.subr.bf16.mxu0 0
      %454 = vmatpush1.bf16.msra.mxu0 0
      %455 = vmatprep.subr.bf16.mxu0 0
      %456 = vmatpush1.bf16.msra.mxu0 0
      %457 = vmatprep.subr.bf16.mxu0 0
      %458 = vmatpush1.bf16.msra.mxu0 0
      %459 = vmatprep.mubr.bf16.mxu0 0
      %460 = vmatmul.mubr.bf16.gmra.mrb[0].mxu0 %v376
      %v461 = vpop.f32.mrb[0].mxu0
      %v462 = vadd.f32 0.0, %v461
      %v463 = vpop.f32.mrb[0].mxu0
      %v464 = vpop.f32.mrb[0].mxu0
      %v465 = vadd.f32 0.0, %v464
      %v466 = vpop.f32.mrb[0].mxu0
      %467 = vdwg.mxu0
      %v470 = vunpack.c.l.b16 %v342
      %v471 = vunpack.c.l.b16 %v343
      %v472 = vpack.c.b16 %v471, %v470
      %473 = vrot.lane.b32.xlu0 %v472, 127
      %v474 = vpop.permute.xlu0 %473
      %476 = vmatprep.subr.bf16.mxu0 0
      %477 = vmatpush1.bf16.msra.mxu0 %v474
      %478 = vmatprep.subr.bf16.mxu0 0
      %479 = vmatpush1.bf16.msra.mxu0 0
      %480 = vmatprep.subr.bf16.mxu0 0
      %481 = vmatpush1.bf16.msra.mxu0 0
      %482 = vmatprep.subr.bf16.mxu0 0
      %483 = vmatpush1.bf16.msra.mxu0 0
      %484 = vmatprep.subr.bf16.mxu0 0
      %485 = vmatpush1.bf16.msra.mxu0 0
      %486 = vmatprep.subr.bf16.mxu0 0
      %487 = vmatpush1.bf16.msra.mxu0 0
      %488 = vmatprep.subr.bf16.mxu0 0
      %489 = vmatpush1.bf16.msra.mxu0 0
      %490 = vmatprep.subr.bf16.mxu0 0
      %491 = vmatpush1.bf16.msra.mxu0 0
      %492 = vmatprep.subr.bf16.mxu0 0
      %493 = vmatpush1.bf16.msra.mxu0 0
      %494 = vmatprep.subr.bf16.mxu0 0
      %495 = vmatpush1.bf16.msra.mxu0 0
      %496 = vmatprep.subr.bf16.mxu0 0
      %497 = vmatpush1.bf16.msra.mxu0 0
      %498 = vmatprep.subr.bf16.mxu0 0
      %499 = vmatpush1.bf16.msra.mxu0 0
      %500 = vmatprep.subr.bf16.mxu0 0
      %501 = vmatpush1.bf16.msra.mxu0 0
      %502 = vmatprep.subr.bf16.mxu0 0
      %503 = vmatpush1.bf16.msra.mxu0 0
      %504 = vmatprep.subr.bf16.mxu0 0
      %505 = vmatpush1.bf16.msra.mxu0 0
      %506 = vmatprep.subr.bf16.mxu0 0
      %507 = vmatpush1.bf16.msra.mxu0 0
      %508 = vmatprep.mubr.bf16.mxu0 0
      %509 = vmatmul.mubr.bf16.gmra.mrb[0].mxu0 %v376
      %v510 = vpop.f32.mrb[0].mxu0
      %v511 = vadd.f32 0.0, %v510
      %v512 = vpop.f32.mrb[0].mxu0
      %v513 = vpop.f32.mrb[0].mxu0
      %v514 = vadd.f32 0.0, %v513
      %v515 = vpop.f32.mrb[0].mxu0
      %516 = vdwg.mxu0
      %v519 = vunpack.c.l.b16 %v344
      %v520 = vunpack.c.l.b16 %v345
      %v521 = vpack.c.b16 %v520, %v519
      %522 = vrot.lane.b32.xlu0 %v521, 127
      %v523 = vpop.permute.xlu0 %522
      %525 = vmatprep.subr.bf16.mxu0 0
      %526 = vmatpush1.bf16.msra.mxu0 %v523
      %527 = vmatprep.subr.bf16.mxu0 0
      %528 = vmatpush1.bf16.msra.mxu0 0
      %529 = vmatprep.subr.bf16.mxu0 0
      %530 = vmatpush1.bf16.msra.mxu0 0
      %531 = vmatprep.subr.bf16.mxu0 0
      %532 = vmatpush1.bf16.msra.mxu0 0
      %533 = vmatprep.subr.bf16.mxu0 0
      %534 = vmatpush1.bf16.msra.mxu0 0
      %535 = vmatprep.subr.bf16.mxu0 0
      %536 = vmatpush1.bf16.msra.mxu0 0
      %537 = vmatprep.subr.bf16.mxu0 0
      %538 = vmatpush1.bf16.msra.mxu0 0
      %539 = vmatprep.subr.bf16.mxu0 0
      %540 = vmatpush1.bf16.msra.mxu0 0
      %541 = vmatprep.subr.bf16.mxu0 0
      %542 = vmatpush1.bf16.msra.mxu0 0
      %543 = vmatprep.subr.bf16.mxu0 0
      %544 = vmatpush1.bf16.msra.mxu0 0
      %545 = vmatprep.subr.bf16.mxu0 0
      %546 = vmatpush1.bf16.msra.mxu0 0
      %547 = vmatprep.subr.bf16.mxu0 0
      %548 = vmatpush1.bf16.msra.mxu0 0
      %549 = vmatprep.subr.bf16.mxu0 0
      %550 = vmatpush1.bf16.msra.mxu0 0
      %551 = vmatprep.subr.bf16.mxu0 0
      %552 = vmatpush1.bf16.msra.mxu0 0
      %553 = vmatprep.subr.bf16.mxu0 0
      %554 = vmatpush1.bf16.msra.mxu0 0
      %555 = vmatprep.subr.bf16.mxu0 0
      %556 = vmatpush1.bf16.msra.mxu0 0
      %557 = vmatprep.mubr.bf16.mxu0 0
      %558 = vmatmul.mubr.bf16.gmra.mrb[0].mxu0 %v376
      %v559 = vpop.f32.mrb[0].mxu0
      %v560 = vadd.f32 0.0, %v559
      %v561 = vpop.f32.mrb[0].mxu0
      %v562 = vpop.f32.mrb[0].mxu0
      %v563 = vadd.f32 0.0, %v562
      %v564 = vpop.f32.mrb[0].mxu0
      %565 = vdwg.mxu0
      %v568 = vunpack.c.l.b16 %v346
      %v569 = vunpack.c.l.b16 %v347
      %v570 = vpack.c.b16 %v569, %v568
      %571 = vrot.lane.b32.xlu0 %v570, 127
      %v572 = vpop.permute.xlu0 %571
      %574 = vmatprep.subr.bf16.mxu0 0
      %575 = vmatpush1.bf16.msra.mxu0 %v572
      %576 = vmatprep.subr.bf16.mxu0 0
      %577 = vmatpush1.bf16.msra.mxu0 0
      %578 = vmatprep.subr.bf16.mxu0 0
      %579 = vmatpush1.bf16.msra.mxu0 0
      %580 = vmatprep.subr.bf16.mxu0 0
      %581 = vmatpush1.bf16.msra.mxu0 0
      %582 = vmatprep.subr.bf16.mxu0 0
      %583 = vmatpush1.bf16.msra.mxu0 0
      %584 = vmatprep.subr.bf16.mxu0 0
      %585 = vmatpush1.bf16.msra.mxu0 0
      %586 = vmatprep.subr.bf16.mxu0 0
      %587 = vmatpush1.bf16.msra.mxu0 0
      %588 = vmatprep.subr.bf16.mxu0 0
      %589 = vmatpush1.bf16.msra.mxu0 0
      %590 = vmatprep.subr.bf16.mxu0 0
      %591 = vmatpush1.bf16.msra.mxu0 0
      %592 = vmatprep.subr.bf16.mxu0 0
      %593 = vmatpush1.bf16.msra.mxu0 0
      %594 = vmatprep.subr.bf16.mxu0 0
      %595 = vmatpush1.bf16.msra.mxu0 0
      %596 = vmatprep.subr.bf16.mxu0 0
      %597 = vmatpush1.bf16.msra.mxu0 0
      %598 = vmatprep.subr.bf16.mxu0 0
      %599 = vmatpush1.bf16.msra.mxu0 0
      %600 = vmatprep.subr.bf16.mxu0 0
      %601 = vmatpush1.bf16.msra.mxu0 0
      %602 = vmatprep.subr.bf16.mxu0 0
      %603 = vmatpush1.bf16.msra.mxu0 0
      %604 = vmatprep.subr.bf16.mxu0 0
      %605 = vmatpush1.bf16.msra.mxu0 0
      %606 = vmatprep.mubr.bf16.mxu0 0
      %607 = vmatmul.mubr.bf16.gmra.mrb[0].mxu0 %v376
      %v608 = vpop.f32.mrb[0].mxu0
      %v609 = vadd.f32 0.0, %v608
      %v610 = vpop.f32.mrb[0].mxu0
      %v611 = vpop.f32.mrb[0].mxu0
      %v612 = vadd.f32 0.0, %v611
      %v613 = vpop.f32.mrb[0].mxu0
      %614 = vdwg.mxu0
      %v617 = vunpack.c.l.b16 %v348
      %v618 = vunpack.c.l.b16 %v349
      %v619 = vpack.c.b16 %v618, %v617
      %620 = vrot.lane.b32.xlu0 %v619, 127
      %v621 = vpop.permute.xlu0 %620
      %623 = vmatprep.subr.bf16.mxu0 0
      %624 = vmatpush1.bf16.msra.mxu0 %v621
      %625 = vmatprep.subr.bf16.mxu0 0
      %626 = vmatpush1.bf16.msra.mxu0 0
      %627 = vmatprep.subr.bf16.mxu0 0
      %628 = vmatpush1.bf16.msra.mxu0 0
      %629 = vmatprep.subr.bf16.mxu0 0
      %630 = vmatpush1.bf16.msra.mxu0 0
      %631 = vmatprep.subr.bf16.mxu0 0
      %632 = vmatpush1.bf16.msra.mxu0 0
      %633 = vmatprep.subr.bf16.mxu0 0
      %634 = vmatpush1.bf16.msra.mxu0 0
      %635 = vmatprep.subr.bf16.mxu0 0
      %636 = vmatpush1.bf16.msra.mxu0 0
      %637 = vmatprep.subr.bf16.mxu0 0
      %638 = vmatpush1.bf16.msra.mxu0 0
      %639 = vmatprep.subr.bf16.mxu0 0
      %640 = vmatpush1.bf16.msra.mxu0 0
      %641 = vmatprep.subr.bf16.mxu0 0
      %642 = vmatpush1.bf16.msra.mxu0 0
      %643 = vmatprep.subr.bf16.mxu0 0
      %644 = vmatpush1.bf16.msra.mxu0 0
      %645 = vmatprep.subr.bf16.mxu0 0
      %646 = vmatpush1.bf16.msra.mxu0 0
      %647 = vmatprep.subr.bf16.mxu0 0
      %648 = vmatpush1.bf16.msra.mxu0 0
      %649 = vmatprep.subr.bf16.mxu0 0
      %650 = vmatpush1.bf16.msra.mxu0 0
      %651 = vmatprep.subr.bf16.mxu0 0
      %652 = vmatpush1.bf16.msra.mxu0 0
      %653 = vmatprep.subr.bf16.mxu0 0
      %654 = vmatpush1.bf16.msra.mxu0 0
      %655 = vmatprep.mubr.bf16.mxu0 0
      %656 = vmatmul.mubr.bf16.gmra.mrb[0].mxu0 %v376
      %v657 = vpop.f32.mrb[0].mxu0
      %v658 = vadd.f32 0.0, %v657
      %v659 = vpop.f32.mrb[0].mxu0
      %v660 = vpop.f32.mrb[0].mxu0
      %v661 = vadd.f32 0.0, %v660
      %v662 = vpop.f32.mrb[0].mxu0
      %663 = vdwg.mxu0
      %v666 = vunpack.c.l.b16 %v350
      %v667 = vunpack.c.l.b16 %v351
      %v668 = vpack.c.b16 %v667, %v666
      %669 = vrot.lane.b32.xlu0 %v668, 127
      %v670 = vpop.permute.xlu0 %669
      %672 = vmatprep.subr.bf16.mxu0 0
      %673 = vmatpush1.bf16.msra.mxu0 %v670
      %674 = vmatprep.subr.bf16.mxu0 0
      %675 = vmatpush1.bf16.msra.mxu0 0
      %676 = vmatprep.subr.bf16.mxu0 0
      %677 = vmatpush1.bf16.msra.mxu0 0
      %678 = vmatprep.subr.bf16.mxu0 0
      %679 = vmatpush1.bf16.msra.mxu0 0
      %680 = vmatprep.subr.bf16.mxu0 0
      %681 = vmatpush1.bf16.msra.mxu0 0
      %682 = vmatprep.subr.bf16.mxu0 0
      %683 = vmatpush1.bf16.msra.mxu0 0
      %684 = vmatprep.subr.bf16.mxu0 0
      %685 = vmatpush1.bf16.msra.mxu0 0
      %686 = vmatprep.subr.bf16.mxu0 0
      %687 = vmatpush1.bf16.msra.mxu0 0
      %688 = vmatprep.subr.bf16.mxu0 0
      %689 = vmatpush1.bf16.msra.mxu0 0
      %690 = vmatprep.subr.bf16.mxu0 0
      %691 = vmatpush1.bf16.msra.mxu0 0
      %692 = vmatprep.subr.bf16.mxu0 0
      %693 = vmatpush1.bf16.msra.mxu0 0
      %694 = vmatprep.subr.bf16.mxu0 0
      %695 = vmatpush1.bf16.msra.mxu0 0
      %696 = vmatprep.subr.bf16.mxu0 0
      %697 = vmatpush1.bf16.msra.mxu0 0
      %698 = vmatprep.subr.bf16.mxu0 0
      %699 = vmatpush1.bf16.msra.mxu0 0
      %700 = vmatprep.subr.bf16.mxu0 0
      %701 = vmatpush1.bf16.msra.mxu0 0
      %702 = vmatprep.subr.bf16.mxu0 0
      %703 = vmatpush1.bf16.msra.mxu0 0
      %704 = vmatprep.mubr.bf16.mxu0 0
      %705 = vmatmul.mubr.bf16.gmra.mrb[0].mxu0 %v376
      %v706 = vpop.f32.mrb[0].mxu0
      %v707 = vadd.f32 0.0, %v706
      %v708 = vpop.f32.mrb[0].mxu0
      %v709 = vpop.f32.mrb[0].mxu0
      %v710 = vadd.f32 0.0, %v709
      %v711 = vpop.f32.mrb[0].mxu0
      %712 = vdwg.mxu0
      %v715 = vunpack.c.l.b16 %v352
      %v716 = vunpack.c.l.b16 %v353
      %v717 = vpack.c.b16 %v716, %v715
      %718 = vrot.lane.b32.xlu0 %v717, 127
      %v719 = vpop.permute.xlu0 %718
      %721 = vmatprep.subr.bf16.mxu0 0
      %722 = vmatpush1.bf16.msra.mxu0 %v719
      %723 = vmatprep.subr.bf16.mxu0 0
      %724 = vmatpush1.bf16.msra.mxu0 0
      %725 = vmatprep.subr.bf16.mxu0 0
      %726 = vmatpush1.bf16.msra.mxu0 0
      %727 = vmatprep.subr.bf16.mxu0 0
      %728 = vmatpush1.bf16.msra.mxu0 0
      %729 = vmatprep.subr.bf16.mxu0 0
      %730 = vmatpush1.bf16.msra.mxu0 0
      %731 = vmatprep.subr.bf16.mxu0 0
      %732 = vmatpush1.bf16.msra.mxu0 0
      %733 = vmatprep.subr.bf16.mxu0 0
      %734 = vmatpush1.bf16.msra.mxu0 0
      %735 = vmatprep.subr.bf16.mxu0 0
      %736 = vmatpush1.bf16.msra.mxu0 0
      %737 = vmatprep.subr.bf16.mxu0 0
      %738 = vmatpush1.bf16.msra.mxu0 0
      %739 = vmatprep.subr.bf16.mxu0 0
      %740 = vmatpush1.bf16.msra.mxu0 0
      %741 = vmatprep.subr.bf16.mxu0 0
      %742 = vmatpush1.bf16.msra.mxu0 0
      %743 = vmatprep.subr.bf16.mxu0 0
      %744 = vmatpush1.bf16.msra.mxu0 0
      %745 = vmatprep.subr.bf16.mxu0 0
      %746 = vmatpush1.bf16.msra.mxu0 0
      %747 = vmatprep.subr.bf16.mxu0 0
      %748 = vmatpush1.bf16.msra.mxu0 0
      %749 = vmatprep.subr.bf16.mxu0 0
      %750 = vmatpush1.bf16.msra.mxu0 0
      %751 = vmatprep.subr.bf16.mxu0 0
      %752 = vmatpush1.bf16.msra.mxu0 0
      %753 = vmatprep.mubr.bf16.mxu0 0
      %754 = vmatmul.mubr.bf16.gmra.mrb[0].mxu0 %v376
      %v755 = vpop.f32.mrb[0].mxu0
      %v756 = vadd.f32 0.0, %v755
      %v757 = vpop.f32.mrb[0].mxu0
      %v758 = vpop.f32.mrb[0].mxu0
      %v759 = vadd.f32 0.0, %v758
      %v760 = vpop.f32.mrb[0].mxu0
      %761 = vdwg.mxu0
      %v764 = vunpack.c.l.b16 %v356
      %v765 = vunpack.c.l.b16 %v357
      %v766 = vpack.c.b16 %v765, %v764
      %v769 = vsel %vm374, %v766, 0
      %771 = vmatprep.subr.bf16.mxu0 0
      %772 = vmatpush1.bf16.msra.mxu0 %v370
      %773 = vmatprep.subr.bf16.mxu0 0
      %774 = vmatpush1.bf16.msra.mxu0 0
      %775 = vmatprep.subr.bf16.mxu0 0
      %776 = vmatpush1.bf16.msra.mxu0 0
      %777 = vmatprep.subr.bf16.mxu0 0
      %778 = vmatpush1.bf16.msra.mxu0 0
      %779 = vmatprep.subr.bf16.mxu0 0
      %780 = vmatpush1.bf16.msra.mxu0 0
      %781 = vmatprep.subr.bf16.mxu0 0
      %782 = vmatpush1.bf16.msra.mxu0 0
      %783 = vmatprep.subr.bf16.mxu0 0
      %784 = vmatpush1.bf16.msra.mxu0 0
      %785 = vmatprep.subr.bf16.mxu0 0
      %786 = vmatpush1.bf16.msra.mxu0 0
      %787 = vmatprep.subr.bf16.mxu0 0
      %788 = vmatpush1.bf16.msra.mxu0 0
      %789 = vmatprep.subr.bf16.mxu0 0
      %790 = vmatpush1.bf16.msra.mxu0 0
      %791 = vmatprep.subr.bf16.mxu0 0
      %792 = vmatpush1.bf16.msra.mxu0 0
      %793 = vmatprep.subr.bf16.mxu0 0
      %794 = vmatpush1.bf16.msra.mxu0 0
      %795 = vmatprep.subr.bf16.mxu0 0
      %796 = vmatpush1.bf16.msra.mxu0 0
      %797 = vmatprep.subr.bf16.mxu0 0
      %798 = vmatpush1.bf16.msra.mxu0 0
      %799 = vmatprep.subr.bf16.mxu0 0
      %800 = vmatpush1.bf16.msra.mxu0 0
      %801 = vmatprep.subr.bf16.mxu0 0
      %802 = vmatpush1.bf16.msra.mxu0 0
      %803 = vmatprep.mubr.bf16.mxu0 0
      %804 = vmatmul.mubr.bf16.gmra.mrb[0].mxu0 %v769
      %v805 = vpop.f32.mrb[0].mxu0
      %v806 = vadd.f32 %v413, %v805
      %v807 = vpop.f32.mrb[0].mxu0
      %v808 = vpop.f32.mrb[0].mxu0
      %v809 = vadd.f32 %v416, %v808
      %v810 = vpop.f32.mrb[0].mxu0
      %811 = vdwg.mxu0
      %813 = vmatprep.subr.bf16.mxu0 0
      %814 = vmatpush1.bf16.msra.mxu0 %v423
      %815 = vmatprep.subr.bf16.mxu0 0
      %816 = vmatpush1.bf16.msra.mxu0 0
      %817 = vmatprep.subr.bf16.mxu0 0
      %818 = vmatpush1.bf16.msra.mxu0 0
      %819 = vmatprep.subr.bf16.mxu0 0
      %820 = vmatpush1.bf16.msra.mxu0 0
      %821 = vmatprep.subr.bf16.mxu0 0
      %822 = vmatpush1.bf16.msra.mxu0 0
      %823 = vmatprep.subr.bf16.mxu0 0
      %824 = vmatpush1.bf16.msra.mxu0 0
      %825 = vmatprep.subr.bf16.mxu0 0
      %826 = vmatpush1.bf16.msra.mxu0 0
      %827 = vmatprep.subr.bf16.mxu0 0
      %828 = vmatpush1.bf16.msra.mxu0 0
      %829 = vmatprep.subr.bf16.mxu0 0
      %830 = vmatpush1.bf16.msra.mxu0 0
      %831 = vmatprep.subr.bf16.mxu0 0
      %832 = vmatpush1.bf16.msra.mxu0 0
      %833 = vmatprep.subr.bf16.mxu0 0
      %834 = vmatpush1.bf16.msra.mxu0 0
      %835 = vmatprep.subr.bf16.mxu0 0
      %836 = vmatpush1.bf16.msra.mxu0 0
      %837 = vmatprep.subr.bf16.mxu0 0
      %838 = vmatpush1.bf16.msra.mxu0 0
      %839 = vmatprep.subr.bf16.mxu0 0
      %840 = vmatpush1.bf16.msra.mxu0 0
      %841 = vmatprep.subr.bf16.mxu0 0
      %842 = vmatpush1.bf16.msra.mxu0 0
      %843 = vmatprep.subr.bf16.mxu0 0
      %844 = vmatpush1.bf16.msra.mxu0 0
      %845 = vmatprep.mubr.bf16.mxu0 0
      %846 = vmatmul.mubr.bf16.gmra.mrb[0].mxu0 %v769
      %v847 = vpop.f32.mrb[0].mxu0
      %v848 = vadd.f32 %v462, %v847
      %v849 = vpop.f32.mrb[0].mxu0
      %v850 = vpop.f32.mrb[0].mxu0
      %v851 = vadd.f32 %v465, %v850
      %v852 = vpop.f32.mrb[0].mxu0
      %853 = vdwg.mxu0
      %855 = vmatprep.subr.bf16.mxu0 0
      %856 = vmatpush1.bf16.msra.mxu0 %v472
      %857 = vmatprep.subr.bf16.mxu0 0
      %858 = vmatpush1.bf16.msra.mxu0 0
      %859 = vmatprep.subr.bf16.mxu0 0
      %860 = vmatpush1.bf16.msra.mxu0 0
      %861 = vmatprep.subr.bf16.mxu0 0
      %862 = vmatpush1.bf16.msra.mxu0 0
      %863 = vmatprep.subr.bf16.mxu0 0
      %864 = vmatpush1.bf16.msra.mxu0 0
      %865 = vmatprep.subr.bf16.mxu0 0
      %866 = vmatpush1.bf16.msra.mxu0 0
      %867 = vmatprep.subr.bf16.mxu0 0
      %868 = vmatpush1.bf16.msra.mxu0 0
      %869 = vmatprep.subr.bf16.mxu0 0
      %870 = vmatpush1.bf16.msra.mxu0 0
      %871 = vmatprep.subr.bf16.mxu0 0
      %872 = vmatpush1.bf16.msra.mxu0 0
      %873 = vmatprep.subr.bf16.mxu0 0
      %874 = vmatpush1.bf16.msra.mxu0 0
      %875 = vmatprep.subr.bf16.mxu0 0
      %876 = vmatpush1.bf16.msra.mxu0 0
      %877 = vmatprep.subr.bf16.mxu0 0
      %878 = vmatpush1.bf16.msra.mxu0 0
      %879 = vmatprep.subr.bf16.mxu0 0
      %880 = vmatpush1.bf16.msra.mxu0 0
      %881 = vmatprep.subr.bf16.mxu0 0
      %882 = vmatpush1.bf16.msra.mxu0 0
      %883 = vmatprep.subr.bf16.mxu0 0
      %884 = vmatpush1.bf16.msra.mxu0 0
      %885 = vmatprep.subr.bf16.mxu0 0
      %886 = vmatpush1.bf16.msra.mxu0 0
      %887 = vmatprep.mubr.bf16.mxu0 0
      %888 = vmatmul.mubr.bf16.gmra.mrb[0].mxu0 %v769
      %v889 = vpop.f32.mrb[0].mxu0
      %v890 = vadd.f32 %v511, %v889
      %v891 = vpop.f32.mrb[0].mxu0
      %v892 = vpop.f32.mrb[0].mxu0
      %v893 = vadd.f32 %v514, %v892
      %v894 = vpop.f32.mrb[0].mxu0
      %895 = vdwg.mxu0
      %897 = vmatprep.subr.bf16.mxu0 0
      %898 = vmatpush1.bf16.msra.mxu0 %v521
      %899 = vmatprep.subr.bf16.mxu0 0
      %900 = vmatpush1.bf16.msra.mxu0 0
      %901 = vmatprep.subr.bf16.mxu0 0
      %902 = vmatpush1.bf16.msra.mxu0 0
      %903 = vmatprep.subr.bf16.mxu0 0
      %904 = vmatpush1.bf16.msra.mxu0 0
      %905 = vmatprep.subr.bf16.mxu0 0
      %906 = vmatpush1.bf16.msra.mxu0 0
      %907 = vmatprep.subr.bf16.mxu0 0
      %908 = vmatpush1.bf16.msra.mxu0 0
      %909 = vmatprep.subr.bf16.mxu0 0
      %910 = vmatpush1.bf16.msra.mxu0 0
      %911 = vmatprep.subr.bf16.mxu0 0
      %912 = vmatpush1.bf16.msra.mxu0 0
      %913 = vmatprep.subr.bf16.mxu0 0
      %914 = vmatpush1.bf16.msra.mxu0 0
      %915 = vmatprep.subr.bf16.mxu0 0
      %916 = vmatpush1.bf16.msra.mxu0 0
      %917 = vmatprep.subr.bf16.mxu0 0
      %918 = vmatpush1.bf16.msra.mxu0 0
      %919 = vmatprep.subr.bf16.mxu0 0
      %920 = vmatpush1.bf16.msra.mxu0 0
      %921 = vmatprep.subr.bf16.mxu0 0
      %922 = vmatpush1.bf16.msra.mxu0 0
      %923 = vmatprep.subr.bf16.mxu0 0
      %924 = vmatpush1.bf16.msra.mxu0 0
      %925 = vmatprep.subr.bf16.mxu0 0
      %926 = vmatpush1.bf16.msra.mxu0 0
      %927 = vmatprep.subr.bf16.mxu0 0
      %928 = vmatpush1.bf16.msra.mxu0 0
      %929 = vmatprep.mubr.bf16.mxu0 0
      %930 = vmatmul.mubr.bf16.gmra.mrb[0].mxu0 %v769
      %v931 = vpop.f32.mrb[0].mxu0
      %v932 = vadd.f32 %v560, %v931
      %v933 = vpop.f32.mrb[0].mxu0
      %v934 = vpop.f32.mrb[0].mxu0
      %v935 = vadd.f32 %v563, %v934
      %v936 = vpop.f32.mrb[0].mxu0
      %937 = vdwg.mxu0
      %939 = vmatprep.subr.bf16.mxu0 0
      %940 = vmatpush1.bf16.msra.mxu0 %v570
      %941 = vmatprep.subr.bf16.mxu0 0
      %942 = vmatpush1.bf16.msra.mxu0 0
      %943 = vmatprep.subr.bf16.mxu0 0
      %944 = vmatpush1.bf16.msra.mxu0 0
      %945 = vmatprep.subr.bf16.mxu0 0
      %946 = vmatpush1.bf16.msra.mxu0 0
      %947 = vmatprep.subr.bf16.mxu0 0
      %948 = vmatpush1.bf16.msra.mxu0 0
      %949 = vmatprep.subr.bf16.mxu0 0
      %950 = vmatpush1.bf16.msra.mxu0 0
      %951 = vmatprep.subr.bf16.mxu0 0
      %952 = vmatpush1.bf16.msra.mxu0 0
      %953 = vmatprep.subr.bf16.mxu0 0
      %954 = vmatpush1.bf16.msra.mxu0 0
      %955 = vmatprep.subr.bf16.mxu0 0
      %956 = vmatpush1.bf16.msra.mxu0 0
      %957 = vmatprep.subr.bf16.mxu0 0
      %958 = vmatpush1.bf16.msra.mxu0 0
      %959 = vmatprep.subr.bf16.mxu0 0
      %960 = vmatpush1.bf16.msra.mxu0 0
      %961 = vmatprep.subr.bf16.mxu0 0
      %962 = vmatpush1.bf16.msra.mxu0 0
      %963 = vmatprep.subr.bf16.mxu0 0
      %964 = vmatpush1.bf16.msra.mxu0 0
      %965 = vmatprep.subr.bf16.mxu0 0
      %966 = vmatpush1.bf16.msra.mxu0 0
      %967 = vmatprep.subr.bf16.mxu0 0
      %968 = vmatpush1.bf16.msra.mxu0 0
      %969 = vmatprep.subr.bf16.mxu0 0
      %970 = vmatpush1.bf16.msra.mxu0 0
      %971 = vmatprep.mubr.bf16.mxu0 0
      %972 = vmatmul.mubr.bf16.gmra.mrb[0].mxu0 %v769
      %v973 = vpop.f32.mrb[0].mxu0
      %v974 = vadd.f32 %v609, %v973
      %v975 = vpop.f32.mrb[0].mxu0
      %v976 = vpop.f32.mrb[0].mxu0
      %v977 = vadd.f32 %v612, %v976
      %v978 = vpop.f32.mrb[0].mxu0
      %979 = vdwg.mxu0
      %981 = vmatprep.subr.bf16.mxu0 0
      %982 = vmatpush1.bf16.msra.mxu0 %v619
      %983 = vmatprep.subr.bf16.mxu0 0
      %984 = vmatpush1.bf16.msra.mxu0 0
      %985 = vmatprep.subr.bf16.mxu0 0
      %986 = vmatpush1.bf16.msra.mxu0 0
      %987 = vmatprep.subr.bf16.mxu0 0
      %988 = vmatpush1.bf16.msra.mxu0 0
      %989 = vmatprep.subr.bf16.mxu0 0
      %990 = vmatpush1.bf16.msra.mxu0 0
      %991 = vmatprep.subr.bf16.mxu0 0
      %992 = vmatpush1.bf16.msra.mxu0 0
      %993 = vmatprep.subr.bf16.mxu0 0
      %994 = vmatpush1.bf16.msra.mxu0 0
      %995 = vmatprep.subr.bf16.mxu0 0
      %996 = vmatpush1.bf16.msra.mxu0 0
      %997 = vmatprep.subr.bf16.mxu0 0
      %998 = vmatpush1.bf16.msra.mxu0 0
      %999 = vmatprep.subr.bf16.mxu0 0
      %1000 = vmatpush1.bf16.msra.mxu0 0
      %1001 = vmatprep.subr.bf16.mxu0 0
      %1002 = vmatpush1.bf16.msra.mxu0 0
      %1003 = vmatprep.subr.bf16.mxu0 0
      %1004 = vmatpush1.bf16.msra.mxu0 0
      %1005 = vmatprep.subr.bf16.mxu0 0
      %1006 = vmatpush1.bf16.msra.mxu0 0
      %1007 = vmatprep.subr.bf16.mxu0 0
      %1008 = vmatpush1.bf16.msra.mxu0 0
      %1009 = vmatprep.subr.bf16.mxu0 0
      %1010 = vmatpush1.bf16.msra.mxu0 0
      %1011 = vmatprep.subr.bf16.mxu0 0
      %1012 = vmatpush1.bf16.msra.mxu0 0
      %1013 = vmatprep.mubr.bf16.mxu0 0
      %1014 = vmatmul.mubr.bf16.gmra.mrb[0].mxu0 %v769
      %v1015 = vpop.f32.mrb[0].mxu0
      %v1016 = vadd.f32 %v658, %v1015
      %v1017 = vpop.f32.mrb[0].mxu0
      %v1018 = vpop.f32.mrb[0].mxu0
      %v1019 = vadd.f32 %v661, %v1018
      %v1020 = vpop.f32.mrb[0].mxu0
      %1021 = vdwg.mxu0
      %1023 = vmatprep.subr.bf16.mxu0 0
      %1024 = vmatpush1.bf16.msra.mxu0 %v668
      %1025 = vmatprep.subr.bf16.mxu0 0
      %1026 = vmatpush1.bf16.msra.mxu0 0
      %1027 = vmatprep.subr.bf16.mxu0 0
      %1028 = vmatpush1.bf16.msra.mxu0 0
      %1029 = vmatprep.subr.bf16.mxu0 0
      %1030 = vmatpush1.bf16.msra.mxu0 0
      %1031 = vmatprep.subr.bf16.mxu0 0
      %1032 = vmatpush1.bf16.msra.mxu0 0
      %1033 = vmatprep.subr.bf16.mxu0 0
      %1034 = vmatpush1.bf16.msra.mxu0 0
      %1035 = vmatprep.subr.bf16.mxu0 0
      %1036 = vmatpush1.bf16.msra.mxu0 0
      %1037 = vmatprep.subr.bf16.mxu0 0
      %1038 = vmatpush1.bf16.msra.mxu0 0
      %1039 = vmatprep.subr.bf16.mxu0 0
      %1040 = vmatpush1.bf16.msra.mxu0 0
      %1041 = vmatprep.subr.bf16.mxu0 0
      %1042 = vmatpush1.bf16.msra.mxu0 0
      %1043 = vmatprep.subr.bf16.mxu0 0
      %1044 = vmatpush1.bf16.msra.mxu0 0
      %1045 = vmatprep.subr.bf16.mxu0 0
      %1046 = vmatpush1.bf16.msra.mxu0 0
      %1047 = vmatprep.subr.bf16.mxu0 0
      %1048 = vmatpush1.bf16.msra.mxu0 0
      %1049 = vmatprep.subr.bf16.mxu0 0
      %1050 = vmatpush1.bf16.msra.mxu0 0
      %1051 = vmatprep.subr.bf16.mxu0 0
      %1052 = vmatpush1.bf16.msra.mxu0 0
      %1053 = vmatprep.subr.bf16.mxu0 0
      %1054 = vmatpush1.bf16.msra.mxu0 0
      %1055 = vmatprep.mubr.bf16.mxu0 0
      %1056 = vmatmul.mubr.bf16.gmra.mrb[0].mxu0 %v769
      %v1057 = vpop.f32.mrb[0].mxu0
      %v1058 = vadd.f32 %v707, %v1057
      %v1059 = vpop.f32.mrb[0].mxu0
      %v1060 = vpop.f32.mrb[0].mxu0
      %v1061 = vadd.f32 %v710, %v1060
      %v1062 = vpop.f32.mrb[0].mxu0
      %1063 = vdwg.mxu0
      %1065 = vmatprep.subr.bf16.mxu0 0
      %1066 = vmatpush1.bf16.msra.mxu0 %v717
      %1067 = vmatprep.subr.bf16.mxu0 0
      %1068 = vmatpush1.bf16.msra.mxu0 0
      %1069 = vmatprep.subr.bf16.mxu0 0
      %1070 = vmatpush1.bf16.msra.mxu0 0
      %1071 = vmatprep.subr.bf16.mxu0 0
      %1072 = vmatpush1.bf16.msra.mxu0 0
      %1073 = vmatprep.subr.bf16.mxu0 0
      %1074 = vmatpush1.bf16.msra.mxu0 0
      %1075 = vmatprep.subr.bf16.mxu0 0
      %1076 = vmatpush1.bf16.msra.mxu0 0
      %1077 = vmatprep.subr.bf16.mxu0 0
      %1078 = vmatpush1.bf16.msra.mxu0 0
      %1079 = vmatprep.subr.bf16.mxu0 0
      %1080 = vmatpush1.bf16.msra.mxu0 0
      %1081 = vmatprep.subr.bf16.mxu0 0
      %1082 = vmatpush1.bf16.msra.mxu0 0
      %1083 = vmatprep.subr.bf16.mxu0 0
      %1084 = vmatpush1.bf16.msra.mxu0 0
      %1085 = vmatprep.subr.bf16.mxu0 0
      %1086 = vmatpush1.bf16.msra.mxu0 0
      %1087 = vmatprep.subr.bf16.mxu0 0
      %1088 = vmatpush1.bf16.msra.mxu0 0
      %1089 = vmatprep.subr.bf16.mxu0 0
      %1090 = vmatpush1.bf16.msra.mxu0 0
      %1091 = vmatprep.subr.bf16.mxu0 0
      %1092 = vmatpush1.bf16.msra.mxu0 0
      %1093 = vmatprep.subr.bf16.mxu0 0
      %1094 = vmatpush1.bf16.msra.mxu0 0
      %1095 = vmatprep.subr.bf16.mxu0 0
      %1096 = vmatpush1.bf16.msra.mxu0 0
      %1097 = vmatprep.mubr.bf16.mxu0 0
      %1098 = vmatmul.mubr.bf16.gmra.mrb[0].mxu0 %v769
      %v1099 = vpop.f32.mrb[0].mxu0
      %v1100 = vadd.f32 %v756, %v1099
      %v1101 = vpop.f32.mrb[0].mxu0
      %v1102 = vpop.f32.mrb[0].mxu0
      %v1103 = vadd.f32 %v759, %v1102
      %v1104 = vpop.f32.mrb[0].mxu0
      %1105 = vdwg.mxu0
      %s1106 = scalar_lea.vmem %s2, 16
      %v1107 = vld [vmem:[%s1106] sm:$0xf]
      %v1108 = vld [vmem:[%s1106 + $0x4] sm:$0x3]
      %v1111 = vunpack.c.l.b16 %v1107
      %v1112 = vunpack.c.l.b16 %v1108
      %v1113 = vpack.c.b16 %v1112, %v1111
      %v1115 = vsel %vm374, %v1113, 0
      %1117 = vmatprep.subr.bf16.mxu0 0
      %1118 = vmatpush1.bf16.msra.mxu0 %v423
      %1119 = vmatprep.subr.bf16.mxu0 0
      %1120 = vmatpush1.bf16.msra.mxu0 0
      %1121 = vmatprep.subr.bf16.mxu0 0
      %1122 = vmatpush1.bf16.msra.mxu0 0
      %1123 = vmatprep.subr.bf16.mxu0 0
      %1124 = vmatpush1.bf16.msra.mxu0 0
      %1125 = vmatprep.subr.bf16.mxu0 0
      %1126 = vmatpush1.bf16.msra.mxu0 0
      %1127 = vmatprep.subr.bf16.mxu0 0
      %1128 = vmatpush1.bf16.msra.mxu0 0
      %1129 = vmatprep.subr.bf16.mxu0 0
      %1130 = vmatpush1.bf16.msra.mxu0 0
      %1131 = vmatprep.subr.bf16.mxu0 0
      %1132 = vmatpush1.bf16.msra.mxu0 0
      %1133 = vmatprep.subr.bf16.mxu0 0
      %1134 = vmatpush1.bf16.msra.mxu0 0
      %1135 = vmatprep.subr.bf16.mxu0 0
      %1136 = vmatpush1.bf16.msra.mxu0 0
      %1137 = vmatprep.subr.bf16.mxu0 0
      %1138 = vmatpush1.bf16.msra.mxu0 0
      %1139 = vmatprep.subr.bf16.mxu0 0
      %1140 = vmatpush1.bf16.msra.mxu0 0
      %1141 = vmatprep.subr.bf16.mxu0 0
      %1142 = vmatpush1.bf16.msra.mxu0 0
      %1143 = vmatprep.subr.bf16.mxu0 0
      %1144 = vmatpush1.bf16.msra.mxu0 0
      %1145 = vmatprep.subr.bf16.mxu0 0
      %1146 = vmatpush1.bf16.msra.mxu0 0
      %1147 = vmatprep.subr.bf16.mxu0 0
      %1148 = vmatpush1.bf16.msra.mxu0 0
      %1149 = vmatprep.mubr.bf16.mxu0 0
      %1150 = vmatmul.mubr.bf16.gmra.mrb[0].mxu0 %v1115
      %v1151 = vpop.f32.mrb[0].mxu0
      %v1152 = vadd.f32 0.0, %v1151
      %v1153 = vpop.f32.mrb[0].mxu0
      %v1154 = vpop.f32.mrb[0].mxu0
      %v1155 = vadd.f32 0.0, %v1154
      %v1156 = vpop.f32.mrb[0].mxu0
      %1157 = vdwg.mxu0
      %1158 = vmatprep.subr.bf16.mxu0 0
      %1159 = vmatpush1.bf16.msra.mxu0 %v472
      %1160 = vmatprep.subr.bf16.mxu0 0
      %1161 = vmatpush1.bf16.msra.mxu0 0
      %1162 = vmatprep.subr.bf16.mxu0 0
      %1163 = vmatpush1.bf16.msra.mxu0 0
      %1164 = vmatprep.subr.bf16.mxu0 0
      %1165 = vmatpush1.bf16.msra.mxu0 0
      %1166 = vmatprep.subr.bf16.mxu0 0
      %1167 = vmatpush1.bf16.msra.mxu0 0
      %1168 = vmatprep.subr.bf16.mxu0 0
      %1169 = vmatpush1.bf16.msra.mxu0 0
      %1170 = vmatprep.subr.bf16.mxu0 0
      %1171 = vmatpush1.bf16.msra.mxu0 0
      %1172 = vmatprep.subr.bf16.mxu0 0
      %1173 = vmatpush1.bf16.msra.mxu0 0
      %1174 = vmatprep.subr.bf16.mxu0 0
      %1175 = vmatpush1.bf16.msra.mxu0 0
      %1176 = vmatprep.subr.bf16.mxu0 0
      %1177 = vmatpush1.bf16.msra.mxu0 0
      %1178 = vmatprep.subr.bf16.mxu0 0
      %1179 = vmatpush1.bf16.msra.mxu0 0
      %1180 = vmatprep.subr.bf16.mxu0 0
      %1181 = vmatpush1.bf16.msra.mxu0 0
      %1182 = vmatprep.subr.bf16.mxu0 0
      %1183 = vmatpush1.bf16.msra.mxu0 0
      %1184 = vmatprep.subr.bf16.mxu0 0
      %1185 = vmatpush1.bf16.msra.mxu0 0
      %1186 = vmatprep.subr.bf16.mxu0 0
      %1187 = vmatpush1.bf16.msra.mxu0 0
      %1188 = vmatprep.subr.bf16.mxu0 0
      %1189 = vmatpush1.bf16.msra.mxu0 0
      %1190 = vmatprep.mubr.bf16.mxu0 0
      %1191 = vmatmul.mubr.bf16.gmra.mrb[0].mxu0 %v1115
      %v1192 = vpop.f32.mrb[0].mxu0
      %v1193 = vadd.f32 0.0, %v1192
      %v1194 = vpop.f32.mrb[0].mxu0
      %v1195 = vpop.f32.mrb[0].mxu0
      %v1196 = vadd.f32 0.0, %v1195
      %v1197 = vpop.f32.mrb[0].mxu0
      %1198 = vdwg.mxu0
      %1199 = vmatprep.subr.bf16.mxu0 0
      %1200 = vmatpush1.bf16.msra.mxu0 %v521
      %1201 = vmatprep.subr.bf16.mxu0 0
      %1202 = vmatpush1.bf16.msra.mxu0 0
      %1203 = vmatprep.subr.bf16.mxu0 0
      %1204 = vmatpush1.bf16.msra.mxu0 0
      %1205 = vmatprep.subr.bf16.mxu0 0
      %1206 = vmatpush1.bf16.msra.mxu0 0
      %1207 = vmatprep.subr.bf16.mxu0 0
      %1208 = vmatpush1.bf16.msra.mxu0 0
      %1209 = vmatprep.subr.bf16.mxu0 0
      %1210 = vmatpush1.bf16.msra.mxu0 0
      %1211 = vmatprep.subr.bf16.mxu0 0
      %1212 = vmatpush1.bf16.msra.mxu0 0
      %1213 = vmatprep.subr.bf16.mxu0 0
      %1214 = vmatpush1.bf16.msra.mxu0 0
      %1215 = vmatprep.subr.bf16.mxu0 0
      %1216 = vmatpush1.bf16.msra.mxu0 0
      %1217 = vmatprep.subr.bf16.mxu0 0
      %1218 = vmatpush1.bf16.msra.mxu0 0
      %1219 = vmatprep.subr.bf16.mxu0 0
      %1220 = vmatpush1.bf16.msra.mxu0 0
      %1221 = vmatprep.subr.bf16.mxu0 0
      %1222 = vmatpush1.bf16.msra.mxu0 0
      %1223 = vmatprep.subr.bf16.mxu0 0
      %1224 = vmatpush1.bf16.msra.mxu0 0
      %1225 = vmatprep.subr.bf16.mxu0 0
      %1226 = vmatpush1.bf16.msra.mxu0 0
      %1227 = vmatprep.subr.bf16.mxu0 0
      %1228 = vmatpush1.bf16.msra.mxu0 0
      %1229 = vmatprep.subr.bf16.mxu0 0
      %1230 = vmatpush1.bf16.msra.mxu0 0
      %1231 = vmatprep.mubr.bf16.mxu0 0
      %1232 = vmatmul.mubr.bf16.gmra.mrb[0].mxu0 %v1115
      %v1233 = vpop.f32.mrb[0].mxu0
      %v1234 = vadd.f32 0.0, %v1233
      %v1235 = vpop.f32.mrb[0].mxu0
      %v1236 = vpop.f32.mrb[0].mxu0
      %v1237 = vadd.f32 0.0, %v1236
      %v1238 = vpop.f32.mrb[0].mxu0
      %1239 = vdwg.mxu0
      %1240 = vmatprep.subr.bf16.mxu0 0
      %1241 = vmatpush1.bf16.msra.mxu0 %v570
      %1242 = vmatprep.subr.bf16.mxu0 0
      %1243 = vmatpush1.bf16.msra.mxu0 0
      %1244 = vmatprep.subr.bf16.mxu0 0
      %1245 = vmatpush1.bf16.msra.mxu0 0
      %1246 = vmatprep.subr.bf16.mxu0 0
      %1247 = vmatpush1.bf16.msra.mxu0 0
      %1248 = vmatprep.subr.bf16.mxu0 0
      %1249 = vmatpush1.bf16.msra.mxu0 0
      %1250 = vmatprep.subr.bf16.mxu0 0
      %1251 = vmatpush1.bf16.msra.mxu0 0
      %1252 = vmatprep.subr.bf16.mxu0 0
      %1253 = vmatpush1.bf16.msra.mxu0 0
      %1254 = vmatprep.subr.bf16.mxu0 0
      %1255 = vmatpush1.bf16.msra.mxu0 0
      %1256 = vmatprep.subr.bf16.mxu0 0
      %1257 = vmatpush1.bf16.msra.mxu0 0
      %1258 = vmatprep.subr.bf16.mxu0 0
      %1259 = vmatpush1.bf16.msra.mxu0 0
      %1260 = vmatprep.subr.bf16.mxu0 0
      %1261 = vmatpush1.bf16.msra.mxu0 0
      %1262 = vmatprep.subr.bf16.mxu0 0
      %1263 = vmatpush1.bf16.msra.mxu0 0
      %1264 = vmatprep.subr.bf16.mxu0 0
      %1265 = vmatpush1.bf16.msra.mxu0 0
      %1266 = vmatprep.subr.bf16.mxu0 0
      %1267 = vmatpush1.bf16.msra.mxu0 0
      %1268 = vmatprep.subr.bf16.mxu0 0
      %1269 = vmatpush1.bf16.msra.mxu0 0
      %1270 = vmatprep.subr.bf16.mxu0 0
      %1271 = vmatpush1.bf16.msra.mxu0 0
      %1272 = vmatprep.mubr.bf16.mxu0 0
      %1273 = vmatmul.mubr.bf16.gmra.mrb[0].mxu0 %v1115
      %v1274 = vpop.f32.mrb[0].mxu0
      %v1275 = vadd.f32 0.0, %v1274
      %v1276 = vpop.f32.mrb[0].mxu0
      %v1277 = vpop.f32.mrb[0].mxu0
      %v1278 = vadd.f32 0.0, %v1277
      %v1279 = vpop.f32.mrb[0].mxu0
      %1280 = vdwg.mxu0
      %1281 = vmatprep.subr.bf16.mxu0 0
      %1282 = vmatpush1.bf16.msra.mxu0 %v619
      %1283 = vmatprep.subr.bf16.mxu0 0
      %1284 = vmatpush1.bf16.msra.mxu0 0
      %1285 = vmatprep.subr.bf16.mxu0 0
      %1286 = vmatpush1.bf16.msra.mxu0 0
      %1287 = vmatprep.subr.bf16.mxu0 0
      %1288 = vmatpush1.bf16.msra.mxu0 0
      %1289 = vmatprep.subr.bf16.mxu0 0
      %1290 = vmatpush1.bf16.msra.mxu0 0
      %1291 = vmatprep.subr.bf16.mxu0 0
      %1292 = vmatpush1.bf16.msra.mxu0 0
      %1293 = vmatprep.subr.bf16.mxu0 0
      %1294 = vmatpush1.bf16.msra.mxu0 0
      %1295 = vmatprep.subr.bf16.mxu0 0
      %1296 = vmatpush1.bf16.msra.mxu0 0
      %1297 = vmatprep.subr.bf16.mxu0 0
      %1298 = vmatpush1.bf16.msra.mxu0 0
      %1299 = vmatprep.subr.bf16.mxu0 0
      %1300 = vmatpush1.bf16.msra.mxu0 0
      %1301 = vmatprep.subr.bf16.mxu0 0
      %1302 = vmatpush1.bf16.msra.mxu0 0
      %1303 = vmatprep.subr.bf16.mxu0 0
      %1304 = vmatpush1.bf16.msra.mxu0 0
      %1305 = vmatprep.subr.bf16.mxu0 0
      %1306 = vmatpush1.bf16.msra.mxu0 0
      %1307 = vmatprep.subr.bf16.mxu0 0
      %1308 = vmatpush1.bf16.msra.mxu0 0
      %1309 = vmatprep.subr.bf16.mxu0 0
      %1310 = vmatpush1.bf16.msra.mxu0 0
      %1311 = vmatprep.subr.bf16.mxu0 0
      %1312 = vmatpush1.bf16.msra.mxu0 0
      %1313 = vmatprep.mubr.bf16.mxu0 0
      %1314 = vmatmul.mubr.bf16.gmra.mrb[0].mxu0 %v1115
      %v1315 = vpop.f32.mrb[0].mxu0
      %v1316 = vadd.f32 0.0, %v1315
      %v1317 = vpop.f32.mrb[0].mxu0
      %v1318 = vpop.f32.mrb[0].mxu0
      %v1319 = vadd.f32 0.0, %v1318
      %v1320 = vpop.f32.mrb[0].mxu0
      %1321 = vdwg.mxu0
      %1322 = vmatprep.subr.bf16.mxu0 0
      %1323 = vmatpush1.bf16.msra.mxu0 %v668
      %1324 = vmatprep.subr.bf16.mxu0 0
      %1325 = vmatpush1.bf16.msra.mxu0 0
      %1326 = vmatprep.subr.bf16.mxu0 0
      %1327 = vmatpush1.bf16.msra.mxu0 0
      %1328 = vmatprep.subr.bf16.mxu0 0
      %1329 = vmatpush1.bf16.msra.mxu0 0
      %1330 = vmatprep.subr.bf16.mxu0 0
      %1331 = vmatpush1.bf16.msra.mxu0 0
      %1332 = vmatprep.subr.bf16.mxu0 0
      %1333 = vmatpush1.bf16.msra.mxu0 0
      %1334 = vmatprep.subr.bf16.mxu0 0
      %1335 = vmatpush1.bf16.msra.mxu0 0
      %1336 = vmatprep.subr.bf16.mxu0 0
      %1337 = vmatpush1.bf16.msra.mxu0 0
      %1338 = vmatprep.subr.bf16.mxu0 0
      %1339 = vmatpush1.bf16.msra.mxu0 0
      %1340 = vmatprep.subr.bf16.mxu0 0
      %1341 = vmatpush1.bf16.msra.mxu0 0
      %1342 = vmatprep.subr.bf16.mxu0 0
      %1343 = vmatpush1.bf16.msra.mxu0 0
      %1344 = vmatprep.subr.bf16.mxu0 0
      %1345 = vmatpush1.bf16.msra.mxu0 0
      %1346 = vmatprep.subr.bf16.mxu0 0
      %1347 = vmatpush1.bf16.msra.mxu0 0
      %1348 = vmatprep.subr.bf16.mxu0 0
      %1349 = vmatpush1.bf16.msra.mxu0 0
      %1350 = vmatprep.subr.bf16.mxu0 0
      %1351 = vmatpush1.bf16.msra.mxu0 0
      %1352 = vmatprep.subr.bf16.mxu0 0
      %1353 = vmatpush1.bf16.msra.mxu0 0
      %1354 = vmatprep.mubr.bf16.mxu0 0
      %1355 = vmatmul.mubr.bf16.gmra.mrb[0].mxu0 %v1115
      %v1356 = vpop.f32.mrb[0].mxu0
      %v1357 = vadd.f32 0.0, %v1356
      %v1358 = vpop.f32.mrb[0].mxu0
      %v1359 = vpop.f32.mrb[0].mxu0
      %v1360 = vadd.f32 0.0, %v1359
      %v1361 = vpop.f32.mrb[0].mxu0
      %1362 = vdwg.mxu0
      %1363 = vmatprep.subr.bf16.mxu0 0
      %1364 = vmatpush1.bf16.msra.mxu0 %v717
      %1365 = vmatprep.subr.bf16.mxu0 0
      %1366 = vmatpush1.bf16.msra.mxu0 0
      %1367 = vmatprep.subr.bf16.mxu0 0
      %1368 = vmatpush1.bf16.msra.mxu0 0
      %1369 = vmatprep.subr.bf16.mxu0 0
      %1370 = vmatpush1.bf16.msra.mxu0 0
      %1371 = vmatprep.subr.bf16.mxu0 0
      %1372 = vmatpush1.bf16.msra.mxu0 0
      %1373 = vmatprep.subr.bf16.mxu0 0
      %1374 = vmatpush1.bf16.msra.mxu0 0
      %1375 = vmatprep.subr.bf16.mxu0 0
      %1376 = vmatpush1.bf16.msra.mxu0 0
      %1377 = vmatprep.subr.bf16.mxu0 0
      %1378 = vmatpush1.bf16.msra.mxu0 0
      %1379 = vmatprep.subr.bf16.mxu0 0
      %1380 = vmatpush1.bf16.msra.mxu0 0
      %1381 = vmatprep.subr.bf16.mxu0 0
      %1382 = vmatpush1.bf16.msra.mxu0 0
      %1383 = vmatprep.subr.bf16.mxu0 0
      %1384 = vmatpush1.bf16.msra.mxu0 0
      %1385 = vmatprep.subr.bf16.mxu0 0
      %1386 = vmatpush1.bf16.msra.mxu0 0
      %1387 = vmatprep.subr.bf16.mxu0 0
      %1388 = vmatpush1.bf16.msra.mxu0 0
      %1389 = vmatprep.subr.bf16.mxu0 0
      %1390 = vmatpush1.bf16.msra.mxu0 0
      %1391 = vmatprep.subr.bf16.mxu0 0
      %1392 = vmatpush1.bf16.msra.mxu0 0
      %1393 = vmatprep.subr.bf16.mxu0 0
      %1394 = vmatpush1.bf16.msra.mxu0 0
      %1395 = vmatprep.mubr.bf16.mxu0 0
      %1396 = vmatmul.mubr.bf16.gmra.mrb[0].mxu0 %v1115
      %v1397 = vpop.f32.mrb[0].mxu0
      %v1398 = vadd.f32 0.0, %v1397
      %v1399 = vpop.f32.mrb[0].mxu0
      %v1400 = vpop.f32.mrb[0].mxu0
      %v1401 = vadd.f32 0.0, %v1400
      %v1402 = vpop.f32.mrb[0].mxu0
      %1403 = vdwg.mxu0
      %v1406 = vunpack.c.l.b16 %v354
      %v1407 = vunpack.c.l.b16 %v355
      %v1408 = vpack.c.b16 %v1407, %v1406
      %1410 = vmatprep.subr.bf16.mxu0 0
      %1411 = vmatpush1.bf16.msra.mxu0 %v1408
      %1412 = vmatprep.subr.bf16.mxu0 0
      %1413 = vmatpush1.bf16.msra.mxu0 0
      %1414 = vmatprep.subr.bf16.mxu0 0
      %1415 = vmatpush1.bf16.msra.mxu0 0
      %1416 = vmatprep.subr.bf16.mxu0 0
      %1417 = vmatpush1.bf16.msra.mxu0 0
      %1418 = vmatprep.subr.bf16.mxu0 0
      %1419 = vmatpush1.bf16.msra.mxu0 0
      %1420 = vmatprep.subr.bf16.mxu0 0
      %1421 = vmatpush1.bf16.msra.mxu0 0
      %1422 = vmatprep.subr.bf16.mxu0 0
      %1423 = vmatpush1.bf16.msra.mxu0 0
      %1424 = vmatprep.subr.bf16.mxu0 0
      %1425 = vmatpush1.bf16.msra.mxu0 0
      %1426 = vmatprep.subr.bf16.mxu0 0
      %1427 = vmatpush1.bf16.msra.mxu0 0
      %1428 = vmatprep.subr.bf16.mxu0 0
      %1429 = vmatpush1.bf16.msra.mxu0 0
      %1430 = vmatprep.subr.bf16.mxu0 0
      %1431 = vmatpush1.bf16.msra.mxu0 0
      %1432 = vmatprep.subr.bf16.mxu0 0
      %1433 = vmatpush1.bf16.msra.mxu0 0
      %1434 = vmatprep.subr.bf16.mxu0 0
      %1435 = vmatpush1.bf16.msra.mxu0 0
      %1436 = vmatprep.subr.bf16.mxu0 0
      %1437 = vmatpush1.bf16.msra.mxu0 0
      %1438 = vmatprep.subr.bf16.mxu0 0
      %1439 = vmatpush1.bf16.msra.mxu0 0
      %1440 = vmatprep.subr.bf16.mxu0 0
      %1441 = vmatpush1.bf16.msra.mxu0 0
      %1442 = vmatprep.mubr.bf16.mxu0 0
      %1443 = vmatmul.mubr.bf16.gmra.mrb[0].mxu0 %v1115
      %v1444 = vpop.f32.mrb[0].mxu0
      %v1445 = vadd.f32 0.0, %v1444
      %v1446 = vpop.f32.mrb[0].mxu0
      %v1447 = vpop.f32.mrb[0].mxu0
      %v1448 = vadd.f32 0.0, %v1447
      %v1449 = vpop.f32.mrb[0].mxu0
      %1450 = vdwg.mxu0
      %v1451 = vadd.f32 %v806, %v1152
      %v1452 = vadd.f32 %v809, %v1155
      %v1453 = vadd.f32 %v848, %v1193
      %v1454 = vadd.f32 %v851, %v1196
      %v1455 = vadd.f32 %v890, %v1234
      %v1456 = vadd.f32 %v893, %v1237
      %v1457 = vadd.f32 %v932, %v1275
      %v1458 = vadd.f32 %v935, %v1278
      %v1459 = vadd.f32 %v974, %v1316
      %v1460 = vadd.f32 %v977, %v1319
      %v1461 = vadd.f32 %v1016, %v1357
      %v1462 = vadd.f32 %v1019, %v1360
      %v1463 = vadd.f32 %v1058, %v1398
      %v1464 = vadd.f32 %v1061, %v1401
      %v1465 = vadd.f32 %v1100, %v1445
      %v1466 = vadd.f32 %v1103, %v1448
      %s1467 = scalar_lea.vmem %s2, 24
      %v1468 = vld [vmem:[%s1467] sm:$0xf]
      %v1469 = vld [vmem:[%s1467 + $0x4] sm:$0x3]
      %v1472 = vunpack.c.l.b16 %v1468
      %v1473 = vunpack.c.l.b16 %v1469
      %v1474 = vpack.c.b16 %v1473, %v1472
      %v1476 = vsel %vm374, %v1474, 0
      %1478 = vmatprep.subr.bf16.mxu0 0
      %1479 = vmatpush1.bf16.msra.mxu0 %v425
      %1480 = vmatprep.subr.bf16.mxu0 0
      %1481 = vmatpush1.bf16.msra.mxu0 0
      %1482 = vmatprep.subr.bf16.mxu0 0
      %1483 = vmatpush1.bf16.msra.mxu0 0
      %1484 = vmatprep.subr.bf16.mxu0 0
      %1485 = vmatpush1.bf16.msra.mxu0 0
      %1486 = vmatprep.subr.bf16.mxu0 0
      %1487 = vmatpush1.bf16.msra.mxu0 0
      %1488 = vmatprep.subr.bf16.mxu0 0
      %1489 = vmatpush1.bf16.msra.mxu0 0
      %1490 = vmatprep.subr.bf16.mxu0 0
      %1491 = vmatpush1.bf16.msra.mxu0 0
      %1492 = vmatprep.subr.bf16.mxu0 0
      %1493 = vmatpush1.bf16.msra.mxu0 0
      %1494 = vmatprep.subr.bf16.mxu0 0
      %1495 = vmatpush1.bf16.msra.mxu0 0
      %1496 = vmatprep.subr.bf16.mxu0 0
      %1497 = vmatpush1.bf16.msra.mxu0 0
      %1498 = vmatprep.subr.bf16.mxu0 0
      %1499 = vmatpush1.bf16.msra.mxu0 0
      %1500 = vmatprep.subr.bf16.mxu0 0
      %1501 = vmatpush1.bf16.msra.mxu0 0
      %1502 = vmatprep.subr.bf16.mxu0 0
      %1503 = vmatpush1.bf16.msra.mxu0 0
      %1504 = vmatprep.subr.bf16.mxu0 0
      %1505 = vmatpush1.bf16.msra.mxu0 0
      %1506 = vmatprep.subr.bf16.mxu0 0
      %1507 = vmatpush1.bf16.msra.mxu0 0
      %1508 = vmatprep.subr.bf16.mxu0 0
      %1509 = vmatpush1.bf16.msra.mxu0 0
      %1510 = vmatprep.mubr.bf16.mxu0 0
      %1511 = vmatmul.mubr.bf16.gmra.mrb[0].mxu0 %v1476
      %v1512 = vpop.f32.mrb[0].mxu0
      %v1513 = vadd.f32 0.0, %v1512
      %v1514 = vpop.f32.mrb[0].mxu0
      %v1515 = vpop.f32.mrb[0].mxu0
      %v1516 = vadd.f32 0.0, %v1515
      %v1517 = vpop.f32.mrb[0].mxu0
      %1518 = vdwg.mxu0
      %1519 = vmatprep.subr.bf16.mxu0 0
      %1520 = vmatpush1.bf16.msra.mxu0 %v474
      %1521 = vmatprep.subr.bf16.mxu0 0
      %1522 = vmatpush1.bf16.msra.mxu0 0
      %1523 = vmatprep.subr.bf16.mxu0 0
      %1524 = vmatpush1.bf16.msra.mxu0 0
      %1525 = vmatprep.subr.bf16.mxu0 0
      %1526 = vmatpush1.bf16.msra.mxu0 0
      %1527 = vmatprep.subr.bf16.mxu0 0
      %1528 = vmatpush1.bf16.msra.mxu0 0
      %1529 = vmatprep.subr.bf16.mxu0 0
      %1530 = vmatpush1.bf16.msra.mxu0 0
      %1531 = vmatprep.subr.bf16.mxu0 0
      %1532 = vmatpush1.bf16.msra.mxu0 0
      %1533 = vmatprep.subr.bf16.mxu0 0
      %1534 = vmatpush1.bf16.msra.mxu0 0
      %1535 = vmatprep.subr.bf16.mxu0 0
      %1536 = vmatpush1.bf16.msra.mxu0 0
      %1537 = vmatprep.subr.bf16.mxu0 0
      %1538 = vmatpush1.bf16.msra.mxu0 0
      %1539 = vmatprep.subr.bf16.mxu0 0
      %1540 = vmatpush1.bf16.msra.mxu0 0
      %1541 = vmatprep.subr.bf16.mxu0 0
      %1542 = vmatpush1.bf16.msra.mxu0 0
      %1543 = vmatprep.subr.bf16.mxu0 0
      %1544 = vmatpush1.bf16.msra.mxu0 0
      %1545 = vmatprep.subr.bf16.mxu0 0
      %1546 = vmatpush1.bf16.msra.mxu0 0
      %1547 = vmatprep.subr.bf16.mxu0 0
      %1548 = vmatpush1.bf16.msra.mxu0 0
      %1549 = vmatprep.subr.bf16.mxu0 0
      %1550 = vmatpush1.bf16.msra.mxu0 0
      %1551 = vmatprep.mubr.bf16.mxu0 0
      %1552 = vmatmul.mubr.bf16.gmra.mrb[0].mxu0 %v1476
      %v1553 = vpop.f32.mrb[0].mxu0
      %v1554 = vadd.f32 0.0, %v1553
      %v1555 = vpop.f32.mrb[0].mxu0
      %v1556 = vpop.f32.mrb[0].mxu0
      %v1557 = vadd.f32 0.0, %v1556
      %v1558 = vpop.f32.mrb[0].mxu0
      %1559 = vdwg.mxu0
      %1560 = vmatprep.subr.bf16.mxu0 0
      %1561 = vmatpush1.bf16.msra.mxu0 %v523
      %1562 = vmatprep.subr.bf16.mxu0 0
      %1563 = vmatpush1.bf16.msra.mxu0 0
      %1564 = vmatprep.subr.bf16.mxu0 0
      %1565 = vmatpush1.bf16.msra.mxu0 0
      %1566 = vmatprep.subr.bf16.mxu0 0
      %1567 = vmatpush1.bf16.msra.mxu0 0
      %1568 = vmatprep.subr.bf16.mxu0 0
      %1569 = vmatpush1.bf16.msra.mxu0 0
      %1570 = vmatprep.subr.bf16.mxu0 0
      %1571 = vmatpush1.bf16.msra.mxu0 0
      %1572 = vmatprep.subr.bf16.mxu0 0
      %1573 = vmatpush1.bf16.msra.mxu0 0
      %1574 = vmatprep.subr.bf16.mxu0 0
      %1575 = vmatpush1.bf16.msra.mxu0 0
      %1576 = vmatprep.subr.bf16.mxu0 0
      %1577 = vmatpush1.bf16.msra.mxu0 0
      %1578 = vmatprep.subr.bf16.mxu0 0
      %1579 = vmatpush1.bf16.msra.mxu0 0
      %1580 = vmatprep.subr.bf16.mxu0 0
      %1581 = vmatpush1.bf16.msra.mxu0 0
      %1582 = vmatprep.subr.bf16.mxu0 0
      %1583 = vmatpush1.bf16.msra.mxu0 0
      %1584 = vmatprep.subr.bf16.mxu0 0
      %1585 = vmatpush1.bf16.msra.mxu0 0
      %1586 = vmatprep.subr.bf16.mxu0 0
      %1587 = vmatpush1.bf16.msra.mxu0 0
      %1588 = vmatprep.subr.bf16.mxu0 0
      %1589 = vmatpush1.bf16.msra.mxu0 0
      %1590 = vmatprep.subr.bf16.mxu0 0
      %1591 = vmatpush1.bf16.msra.mxu0 0
      %1592 = vmatprep.mubr.bf16.mxu0 0
      %1593 = vmatmul.mubr.bf16.gmra.mrb[0].mxu0 %v1476
      %v1594 = vpop.f32.mrb[0].mxu0
      %v1595 = vadd.f32 0.0, %v1594
      %v1596 = vpop.f32.mrb[0].mxu0
      %v1597 = vpop.f32.mrb[0].mxu0
      %v1598 = vadd.f32 0.0, %v1597
      %v1599 = vpop.f32.mrb[0].mxu0
      %1600 = vdwg.mxu0
      %1601 = vmatprep.subr.bf16.mxu0 0
      %1602 = vmatpush1.bf16.msra.mxu0 %v572
      %1603 = vmatprep.subr.bf16.mxu0 0
      %1604 = vmatpush1.bf16.msra.mxu0 0
      %1605 = vmatprep.subr.bf16.mxu0 0
      %1606 = vmatpush1.bf16.msra.mxu0 0
      %1607 = vmatprep.subr.bf16.mxu0 0
      %1608 = vmatpush1.bf16.msra.mxu0 0
      %1609 = vmatprep.subr.bf16.mxu0 0
      %1610 = vmatpush1.bf16.msra.mxu0 0
      %1611 = vmatprep.subr.bf16.mxu0 0
      %1612 = vmatpush1.bf16.msra.mxu0 0
      %1613 = vmatprep.subr.bf16.mxu0 0
      %1614 = vmatpush1.bf16.msra.mxu0 0
      %1615 = vmatprep.subr.bf16.mxu0 0
      %1616 = vmatpush1.bf16.msra.mxu0 0
      %1617 = vmatprep.subr.bf16.mxu0 0
      %1618 = vmatpush1.bf16.msra.mxu0 0
      %1619 = vmatprep.subr.bf16.mxu0 0
      %1620 = vmatpush1.bf16.msra.mxu0 0
      %1621 = vmatprep.subr.bf16.mxu0 0
      %1622 = vmatpush1.bf16.msra.mxu0 0
      %1623 = vmatprep.subr.bf16.mxu0 0
      %1624 = vmatpush1.bf16.msra.mxu0 0
      %1625 = vmatprep.subr.bf16.mxu0 0
      %1626 = vmatpush1.bf16.msra.mxu0 0
      %1627 = vmatprep.subr.bf16.mxu0 0
      %1628 = vmatpush1.bf16.msra.mxu0 0
      %1629 = vmatprep.subr.bf16.mxu0 0
      %1630 = vmatpush1.bf16.msra.mxu0 0
      %1631 = vmatprep.subr.bf16.mxu0 0
      %1632 = vmatpush1.bf16.msra.mxu0 0
      %1633 = vmatprep.mubr.bf16.mxu0 0
      %1634 = vmatmul.mubr.bf16.gmra.mrb[0].mxu0 %v1476
      %v1635 = vpop.f32.mrb[0].mxu0
      %v1636 = vadd.f32 0.0, %v1635
      %v1637 = vpop.f32.mrb[0].mxu0
      %v1638 = vpop.f32.mrb[0].mxu0
      %v1639 = vadd.f32 0.0, %v1638
      %v1640 = vpop.f32.mrb[0].mxu0
      %1641 = vdwg.mxu0
      %1642 = vmatprep.subr.bf16.mxu0 0
      %1643 = vmatpush1.bf16.msra.mxu0 %v621
      %1644 = vmatprep.subr.bf16.mxu0 0
      %1645 = vmatpush1.bf16.msra.mxu0 0
      %1646 = vmatprep.subr.bf16.mxu0 0
      %1647 = vmatpush1.bf16.msra.mxu0 0
      %1648 = vmatprep.subr.bf16.mxu0 0
      %1649 = vmatpush1.bf16.msra.mxu0 0
      %1650 = vmatprep.subr.bf16.mxu0 0
      %1651 = vmatpush1.bf16.msra.mxu0 0
      %1652 = vmatprep.subr.bf16.mxu0 0
      %1653 = vmatpush1.bf16.msra.mxu0 0
      %1654 = vmatprep.subr.bf16.mxu0 0
      %1655 = vmatpush1.bf16.msra.mxu0 0
      %1656 = vmatprep.subr.bf16.mxu0 0
      %1657 = vmatpush1.bf16.msra.mxu0 0
      %1658 = vmatprep.subr.bf16.mxu0 0
      %1659 = vmatpush1.bf16.msra.mxu0 0
      %1660 = vmatprep.subr.bf16.mxu0 0
      %1661 = vmatpush1.bf16.msra.mxu0 0
      %1662 = vmatprep.subr.bf16.mxu0 0
      %1663 = vmatpush1.bf16.msra.mxu0 0
      %1664 = vmatprep.subr.bf16.mxu0 0
      %1665 = vmatpush1.bf16.msra.mxu0 0
      %1666 = vmatprep.subr.bf16.mxu0 0
      %1667 = vmatpush1.bf16.msra.mxu0 0
      %1668 = vmatprep.subr.bf16.mxu0 0
      %1669 = vmatpush1.bf16.msra.mxu0 0
      %1670 = vmatprep.subr.bf16.mxu0 0
      %1671 = vmatpush1.bf16.msra.mxu0 0
      %1672 = vmatprep.subr.bf16.mxu0 0
      %1673 = vmatpush1.bf16.msra.mxu0 0
      %1674 = vmatprep.mubr.bf16.mxu0 0
      %1675 = vmatmul.mubr.bf16.gmra.mrb[0].mxu0 %v1476
      %v1676 = vpop.f32.mrb[0].mxu0
      %v1677 = vadd.f32 0.0, %v1676
      %v1678 = vpop.f32.mrb[0].mxu0
      %v1679 = vpop.f32.mrb[0].mxu0
      %v1680 = vadd.f32 0.0, %v1679
      %v1681 = vpop.f32.mrb[0].mxu0
      %1682 = vdwg.mxu0
      %1683 = vmatprep.subr.bf16.mxu0 0
      %1684 = vmatpush1.bf16.msra.mxu0 %v670
      %1685 = vmatprep.subr.bf16.mxu0 0
      %1686 = vmatpush1.bf16.msra.mxu0 0
      %1687 = vmatprep.subr.bf16.mxu0 0
      %1688 = vmatpush1.bf16.msra.mxu0 0
      %1689 = vmatprep.subr.bf16.mxu0 0
      %1690 = vmatpush1.bf16.msra.mxu0 0
      %1691 = vmatprep.subr.bf16.mxu0 0
      %1692 = vmatpush1.bf16.msra.mxu0 0
      %1693 = vmatprep.subr.bf16.mxu0 0
      %1694 = vmatpush1.bf16.msra.mxu0 0
      %1695 = vmatprep.subr.bf16.mxu0 0
      %1696 = vmatpush1.bf16.msra.mxu0 0
      %1697 = vmatprep.subr.bf16.mxu0 0
      %1698 = vmatpush1.bf16.msra.mxu0 0
      %1699 = vmatprep.subr.bf16.mxu0 0
      %1700 = vmatpush1.bf16.msra.mxu0 0
      %1701 = vmatprep.subr.bf16.mxu0 0
      %1702 = vmatpush1.bf16.msra.mxu0 0
      %1703 = vmatprep.subr.bf16.mxu0 0
      %1704 = vmatpush1.bf16.msra.mxu0 0
      %1705 = vmatprep.subr.bf16.mxu0 0
      %1706 = vmatpush1.bf16.msra.mxu0 0
      %1707 = vmatprep.subr.bf16.mxu0 0
      %1708 = vmatpush1.bf16.msra.mxu0 0
      %1709 = vmatprep.subr.bf16.mxu0 0
      %1710 = vmatpush1.bf16.msra.mxu0 0
      %1711 = vmatprep.subr.bf16.mxu0 0
      %1712 = vmatpush1.bf16.msra.mxu0 0
      %1713 = vmatprep.subr.bf16.mxu0 0
      %1714 = vmatpush1.bf16.msra.mxu0 0
      %1715 = vmatprep.mubr.bf16.mxu0 0
      %1716 = vmatmul.mubr.bf16.gmra.mrb[0].mxu0 %v1476
      %v1717 = vpop.f32.mrb[0].mxu0
      %v1718 = vadd.f32 0.0, %v1717
      %v1719 = vpop.f32.mrb[0].mxu0
      %v1720 = vpop.f32.mrb[0].mxu0
      %v1721 = vadd.f32 0.0, %v1720
      %v1722 = vpop.f32.mrb[0].mxu0
      %1723 = vdwg.mxu0
      %1724 = vmatprep.subr.bf16.mxu0 0
      %1725 = vmatpush1.bf16.msra.mxu0 %v719
      %1726 = vmatprep.subr.bf16.mxu0 0
      %1727 = vmatpush1.bf16.msra.mxu0 0
      %1728 = vmatprep.subr.bf16.mxu0 0
      %1729 = vmatpush1.bf16.msra.mxu0 0
      %1730 = vmatprep.subr.bf16.mxu0 0
      %1731 = vmatpush1.bf16.msra.mxu0 0
      %1732 = vmatprep.subr.bf16.mxu0 0
      %1733 = vmatpush1.bf16.msra.mxu0 0
      %1734 = vmatprep.subr.bf16.mxu0 0
      %1735 = vmatpush1.bf16.msra.mxu0 0
      %1736 = vmatprep.subr.bf16.mxu0 0
      %1737 = vmatpush1.bf16.msra.mxu0 0
      %1738 = vmatprep.subr.bf16.mxu0 0
      %1739 = vmatpush1.bf16.msra.mxu0 0
      %1740 = vmatprep.subr.bf16.mxu0 0
      %1741 = vmatpush1.bf16.msra.mxu0 0
      %1742 = vmatprep.subr.bf16.mxu0 0
      %1743 = vmatpush1.bf16.msra.mxu0 0
      %1744 = vmatprep.subr.bf16.mxu0 0
      %1745 = vmatpush1.bf16.msra.mxu0 0
      %1746 = vmatprep.subr.bf16.mxu0 0
      %1747 = vmatpush1.bf16.msra.mxu0 0
      %1748 = vmatprep.subr.bf16.mxu0 0
      %1749 = vmatpush1.bf16.msra.mxu0 0
      %1750 = vmatprep.subr.bf16.mxu0 0
      %1751 = vmatpush1.bf16.msra.mxu0 0
      %1752 = vmatprep.subr.bf16.mxu0 0
      %1753 = vmatpush1.bf16.msra.mxu0 0
      %1754 = vmatprep.subr.bf16.mxu0 0
      %1755 = vmatpush1.bf16.msra.mxu0 0
      %1756 = vmatprep.mubr.bf16.mxu0 0
      %1757 = vmatmul.mubr.bf16.gmra.mrb[0].mxu0 %v1476
      %v1758 = vpop.f32.mrb[0].mxu0
      %v1759 = vadd.f32 0.0, %v1758
      %v1760 = vpop.f32.mrb[0].mxu0
      %v1761 = vpop.f32.mrb[0].mxu0
      %v1762 = vadd.f32 0.0, %v1761
      %v1763 = vpop.f32.mrb[0].mxu0
      %1764 = vdwg.mxu0
      %1765 = vrot.lane.b32.xlu0 %v1408, 127
      %v1766 = vpop.permute.xlu0 %1765
      %1768 = vmatprep.subr.bf16.mxu0 0
      %1769 = vmatpush1.bf16.msra.mxu0 %v1766
      %1770 = vmatprep.subr.bf16.mxu0 0
      %1771 = vmatpush1.bf16.msra.mxu0 0
      %1772 = vmatprep.subr.bf16.mxu0 0
      %1773 = vmatpush1.bf16.msra.mxu0 0
      %1774 = vmatprep.subr.bf16.mxu0 0
      %1775 = vmatpush1.bf16.msra.mxu0 0
      %1776 = vmatprep.subr.bf16.mxu0 0
      %1777 = vmatpush1.bf16.msra.mxu0 0
      %1778 = vmatprep.subr.bf16.mxu0 0
      %1779 = vmatpush1.bf16.msra.mxu0 0
      %1780 = vmatprep.subr.bf16.mxu0 0
      %1781 = vmatpush1.bf16.msra.mxu0 0
      %1782 = vmatprep.subr.bf16.mxu0 0
      %1783 = vmatpush1.bf16.msra.mxu0 0
      %1784 = vmatprep.subr.bf16.mxu0 0
      %1785 = vmatpush1.bf16.msra.mxu0 0
      %1786 = vmatprep.subr.bf16.mxu0 0
      %1787 = vmatpush1.bf16.msra.mxu0 0
      %1788 = vmatprep.subr.bf16.mxu0 0
      %1789 = vmatpush1.bf16.msra.mxu0 0
      %1790 = vmatprep.subr.bf16.mxu0 0
      %1791 = vmatpush1.bf16.msra.mxu0 0
      %1792 = vmatprep.subr.bf16.mxu0 0
      %1793 = vmatpush1.bf16.msra.mxu0 0
      %1794 = vmatprep.subr.bf16.mxu0 0
      %1795 = vmatpush1.bf16.msra.mxu0 0
      %1796 = vmatprep.subr.bf16.mxu0 0
      %1797 = vmatpush1.bf16.msra.mxu0 0
      %1798 = vmatprep.subr.bf16.mxu0 0
      %1799 = vmatpush1.bf16.msra.mxu0 0
      %1800 = vmatprep.mubr.bf16.mxu0 0
      %1801 = vmatmul.mubr.bf16.gmra.mrb[0].mxu0 %v1476
      %v1802 = vpop.f32.mrb[0].mxu0
      %v1803 = vadd.f32 0.0, %v1802
      %v1804 = vpop.f32.mrb[0].mxu0
      %v1805 = vpop.f32.mrb[0].mxu0
      %v1806 = vadd.f32 0.0, %v1805
      %v1807 = vpop.f32.mrb[0].mxu0
      %1808 = vdwg.mxu0
      %v1809 = vadd.f32 %v1451, %v1513
      %v1810 = vadd.f32 %v1452, %v1516
      %v1811 = vadd.f32 %v1453, %v1554
      %v1812 = vadd.f32 %v1454, %v1557
      %v1813 = vadd.f32 %v1455, %v1595
      %v1814 = vadd.f32 %v1456, %v1598
      %v1815 = vadd.f32 %v1457, %v1636
      %v1816 = vadd.f32 %v1458, %v1639
      %v1817 = vadd.f32 %v1459, %v1677
      %v1818 = vadd.f32 %v1460, %v1680
      %v1819 = vadd.f32 %v1461, %v1718
      %v1820 = vadd.f32 %v1462, %v1721
      %v1821 = vadd.f32 %v1463, %v1759
      %v1822 = vadd.f32 %v1464, %v1762
      %v1823 = vadd.f32 %v1465, %v1803
      %v1824 = vadd.f32 %v1466, %v1806
      %v1825 = vld [vmem:[%s3] sm:$0xff]
      %v1826 = vld [vmem:[%s3 + $0x8] sm:$0xff]
      %v1827 = vld [vmem:[%s4] sm:$0xff]
      %v1828 = vld [vmem:[%s4 + $0x8] sm:$0xff]
      %1830 = vset.pattern.permute.xlu0 0
      %1831 = vperm.xlu0 %1830, %v1825
      %v1832 = vpop.permute.xlu0 %1831
      %1835 = vset.pattern.permute.xlu0 0
      %1836 = vperm.xlu0 %1835, %v1826
      %v1837 = vpop.permute.xlu0 %1836
      %v1839 = vmul.f32 %v1809, %v1832
      %v1840 = vmul.f32 %v1810, %v1837
      %v1841 = vmul.f32 %v1811, %v1832
      %v1842 = vmul.f32 %v1812, %v1837
      %v1843 = vmul.f32 %v1813, %v1832
      %v1844 = vmul.f32 %v1814, %v1837
      %v1845 = vmul.f32 %v1815, %v1832
      %v1846 = vmul.f32 %v1816, %v1837
      %v1847 = vmul.f32 %v1817, %v1832
      %v1848 = vmul.f32 %v1818, %v1837
      %v1849 = vmul.f32 %v1819, %v1832
      %v1850 = vmul.f32 %v1820, %v1837
      %v1851 = vmul.f32 %v1821, %v1832
      %v1852 = vmul.f32 %v1822, %v1837
      %v1853 = vmul.f32 %v1823, %v1832
      %v1854 = vmul.f32 %v1824, %v1837
      %1856 = vset.pattern.permute.xlu0 0
      %1857 = vperm.xlu0 %1856, %v1827
      %v1858 = vpop.permute.xlu0 %1857
      %1861 = vset.pattern.permute.xlu0 0
      %1862 = vperm.xlu0 %1861, %v1828
      %v1863 = vpop.permute.xlu0 %1862
      %v1865 = vadd.f32 %v1839, %v1858
      %v1866 = vadd.f32 %v1840, %v1863
      %v1867 = vadd.f32 %v1841, %v1858
      %v1868 = vadd.f32 %v1842, %v1863
      %v1869 = vadd.f32 %v1843, %v1858
      %v1870 = vadd.f32 %v1844, %v1863
      %v1871 = vadd.f32 %v1845, %v1858
      %v1872 = vadd.f32 %v1846, %v1863
      %v1873 = vadd.f32 %v1847, %v1858
      %v1874 = vadd.f32 %v1848, %v1863
      %v1875 = vadd.f32 %v1849, %v1858
      %v1876 = vadd.f32 %v1850, %v1863
      %v1877 = vadd.f32 %v1851, %v1858
      %v1878 = vadd.f32 %v1852, %v1863
      %v1879 = vadd.f32 %v1853, %v1858
      %v1880 = vadd.f32 %v1854, %v1863
      %v1881 = vmax.f32 %v1865, 0.0
      %v1882 = vmax.f32 %v1866, 0.0
      %v1883 = vmax.f32 %v1867, 0.0
      %v1884 = vmax.f32 %v1868, 0.0
      %v1885 = vmax.f32 %v1869, 0.0
      %v1886 = vmax.f32 %v1870, 0.0
      %v1887 = vmax.f32 %v1871, 0.0
      %v1888 = vmax.f32 %v1872, 0.0
      %v1889 = vmax.f32 %v1873, 0.0
      %v1890 = vmax.f32 %v1874, 0.0
      %v1891 = vmax.f32 %v1875, 0.0
      %v1892 = vmax.f32 %v1876, 0.0
      %v1893 = vmax.f32 %v1877, 0.0
      %v1894 = vmax.f32 %v1878, 0.0
      %v1895 = vmax.f32 %v1879, 0.0
      %v1896 = vmax.f32 %v1880, 0.0
      %v1897 = vcombine.low %v1881, %v1885
      %v1898 = vcombine.high %v1881, %v1885
      %v1900 = vunpack.c.l.s4 1983009808
      %v1901 = vunpack.c.0.s8 %v1900
      %v1902 = vlaneseq
      %v1903 = vshrl.u32 %v1902, 7
      %v1904 = vsub.s32 %v1901, %v1903
      %v1905 = vrot.slane %v1897, %v1904
      %v1907 = vunpack.c.l.s4 1983009808
      %v1908 = vunpack.c.0.s8 %v1907
      %v1909 = vlaneseq
      %v1910 = vshrl.u32 %v1909, 7
      %v1911 = vsub.s32 %v1908, %v1910
      %v1912 = vrot.slane %v1898, %v1911
      %v1913 = vcombine.low %v1883, %v1887
      %v1914 = vcombine.high %v1883, %v1887
      %v1916 = vunpack.c.l.s4 1983009808
      %v1917 = vunpack.c.0.s8 %v1916
      %v1918 = vlaneseq
      %v1919 = vshrl.u32 %v1918, 7
      %v1920 = vsub.s32 %v1917, %v1919
      %v1921 = vrot.slane %v1913, %v1920
      %v1923 = vunpack.c.l.s4 1983009808
      %v1924 = vunpack.c.0.s8 %v1923
      %v1925 = vlaneseq
      %v1926 = vshrl.u32 %v1925, 7
      %v1927 = vsub.s32 %v1924, %v1926
      %v1928 = vrot.slane %v1914, %v1927
      %v1929 = vcombine.low %v1889, %v1893
      %v1930 = vcombine.high %v1889, %v1893
      %v1932 = vunpack.c.l.s4 1983009808
      %v1933 = vunpack.c.0.s8 %v1932
      %v1934 = vlaneseq
      %v1935 = vshrl.u32 %v1934, 7
      %v1936 = vsub.s32 %v1933, %v1935
      %v1937 = vrot.slane %v1929, %v1936
      %v1939 = vunpack.c.l.s4 1983009808
      %v1940 = vunpack.c.0.s8 %v1939
      %v1941 = vlaneseq
      %v1942 = vshrl.u32 %v1941, 7
      %v1943 = vsub.s32 %v1940, %v1942
      %v1944 = vrot.slane %v1930, %v1943
      %v1945 = vcombine.low %v1891, %v1895
      %v1946 = vcombine.high %v1891, %v1895
      %v1948 = vunpack.c.l.s4 1983009808
      %v1949 = vunpack.c.0.s8 %v1948
      %v1950 = vlaneseq
      %v1951 = vshrl.u32 %v1950, 7
      %v1952 = vsub.s32 %v1949, %v1951
      %v1953 = vrot.slane %v1945, %v1952
      %v1955 = vunpack.c.l.s4 1983009808
      %v1956 = vunpack.c.0.s8 %v1955
      %v1957 = vlaneseq
      %v1958 = vshrl.u32 %v1957, 7
      %v1959 = vsub.s32 %v1956, %v1958
      %v1960 = vrot.slane %v1946, %v1959
      %v1961 = vcombine.low %v1905, %v1921
      %v1962 = vcombine.high %v1905, %v1921
      %v1964 = vunpack.c.l.s4 1934713408
      %v1965 = vunpack.c.0.s8 %v1964
      %v1966 = vlaneseq
      %v1967 = vshrl.u32 %v1966, 7
      %v1968 = vsub.s32 %v1965, %v1967
      %v1969 = vrot.slane %v1961, %v1968
      %v1971 = vunpack.c.l.s4 1934713408
      %v1972 = vunpack.c.0.s8 %v1971
      %v1973 = vlaneseq
      %v1974 = vshrl.u32 %v1973, 7
      %v1975 = vsub.s32 %v1972, %v1974
      %v1976 = vrot.slane %v1962, %v1975
      %v1977 = vcombine.low %v1912, %v1928
      %v1978 = vcombine.high %v1912, %v1928
      %v1980 = vunpack.c.l.s4 1934713408
      %v1981 = vunpack.c.0.s8 %v1980
      %v1982 = vlaneseq
      %v1983 = vshrl.u32 %v1982, 7
      %v1984 = vsub.s32 %v1981, %v1983
      %v1985 = vrot.slane %v1977, %v1984
      %v1987 = vunpack.c.l.s4 1934713408
      %v1988 = vunpack.c.0.s8 %v1987
      %v1989 = vlaneseq
      %v1990 = vshrl.u32 %v1989, 7
      %v1991 = vsub.s32 %v1988, %v1990
      %v1992 = vrot.slane %v1978, %v1991
      %v1993 = vcombine.low %v1937, %v1953
      %v1994 = vcombine.high %v1937, %v1953
      %v1996 = vunpack.c.l.s4 1934713408
      %v1997 = vunpack.c.0.s8 %v1996
      %v1998 = vlaneseq
      %v1999 = vshrl.u32 %v1998, 7
      %v2000 = vsub.s32 %v1997, %v1999
      %v2001 = vrot.slane %v1993, %v2000
      %v2003 = vunpack.c.l.s4 1934713408
      %v2004 = vunpack.c.0.s8 %v2003
      %v2005 = vlaneseq
      %v2006 = vshrl.u32 %v2005, 7
      %v2007 = vsub.s32 %v2004, %v2006
      %v2008 = vrot.slane %v1994, %v2007
      %v2009 = vcombine.low %v1944, %v1960
      %v2010 = vcombine.high %v1944, %v1960
      %v2012 = vunpack.c.l.s4 1934713408
      %v2013 = vunpack.c.0.s8 %v2012
      %v2014 = vlaneseq
      %v2015 = vshrl.u32 %v2014, 7
      %v2016 = vsub.s32 %v2013, %v2015
      %v2017 = vrot.slane %v2009, %v2016
      %v2019 = vunpack.c.l.s4 1934713408
      %v2020 = vunpack.c.0.s8 %v2019
      %v2021 = vlaneseq
      %v2022 = vshrl.u32 %v2021, 7
      %v2023 = vsub.s32 %v2020, %v2022
      %v2024 = vrot.slane %v2010, %v2023
      %v2025 = vcombine.low %v1969, %v2001
      %v2026 = vcombine.high %v1969, %v2001
      %v2027 = vcombine.low %v1976, %v2008
      %v2028 = vcombine.high %v1976, %v2008
      %v2029 = vcombine.low %v1985, %v2017
      %v2030 = vcombine.high %v1985, %v2017
      %v2031 = vcombine.low %v1992, %v2024
      %v2032 = vcombine.high %v1992, %v2024
      %v2033 = vcombine.low %v1882, %v1886
      %v2035 = vunpack.c.l.s4 1983009808
      %v2036 = vunpack.c.0.s8 %v2035
      %v2037 = vlaneseq
      %v2038 = vshrl.u32 %v2037, 7
      %v2039 = vsub.s32 %v2036, %v2038
      %v2040 = vrot.slane %v2033, %v2039
      %v2041 = vcombine.low %v1884, %v1888
      %v2043 = vunpack.c.l.s4 1983009808
      %v2044 = vunpack.c.0.s8 %v2043
      %v2045 = vlaneseq
      %v2046 = vshrl.u32 %v2045, 7
      %v2047 = vsub.s32 %v2044, %v2046
      %v2048 = vrot.slane %v2041, %v2047
      %v2049 = vcombine.low %v1890, %v1894
      %v2051 = vunpack.c.l.s4 1983009808
      %v2052 = vunpack.c.0.s8 %v2051
      %v2053 = vlaneseq
      %v2054 = vshrl.u32 %v2053, 7
      %v2055 = vsub.s32 %v2052, %v2054
      %v2056 = vrot.slane %v2049, %v2055
      %v2057 = vcombine.low %v1892, %v1896
      %v2059 = vunpack.c.l.s4 1983009808
      %v2060 = vunpack.c.0.s8 %v2059
      %v2061 = vlaneseq
      %v2062 = vshrl.u32 %v2061, 7
      %v2063 = vsub.s32 %v2060, %v2062
      %v2064 = vrot.slane %v2057, %v2063
      %v2065 = vcombine.low %v2040, %v2048
      %v2066 = vcombine.high %v2040, %v2048
      %v2068 = vunpack.c.l.s4 1934713408
      %v2069 = vunpack.c.0.s8 %v2068
      %v2070 = vlaneseq
      %v2071 = vshrl.u32 %v2070, 7
      %v2072 = vsub.s32 %v2069, %v2071
      %v2073 = vrot.slane %v2065, %v2072
      %v2075 = vunpack.c.l.s4 1934713408
      %v2076 = vunpack.c.0.s8 %v2075
      %v2077 = vlaneseq
      %v2078 = vshrl.u32 %v2077, 7
      %v2079 = vsub.s32 %v2076, %v2078
      %v2080 = vrot.slane %v2066, %v2079
      %v2081 = vcombine.low %v2056, %v2064
      %v2082 = vcombine.high %v2056, %v2064
      %v2084 = vunpack.c.l.s4 1934713408
      %v2085 = vunpack.c.0.s8 %v2084
      %v2086 = vlaneseq
      %v2087 = vshrl.u32 %v2086, 7
      %v2088 = vsub.s32 %v2085, %v2087
      %v2089 = vrot.slane %v2081, %v2088
      %v2091 = vunpack.c.l.s4 1934713408
      %v2092 = vunpack.c.0.s8 %v2091
      %v2093 = vlaneseq
      %v2094 = vshrl.u32 %v2093, 7
      %v2095 = vsub.s32 %v2092, %v2094
      %v2096 = vrot.slane %v2082, %v2095
      %v2097 = vcombine.low %v2073, %v2089
      %v2098 = vcombine.high %v2073, %v2089
      %v2099 = vcombine.low %v2080, %v2096
      %v2100 = vcombine.high %v2080, %v2096
      %vm2101 = vcmask 64512
      %2102 = vst.msk [vmem:[%s336] sm:$0xff] %vm2101, %v2025
      %2103 = vst.msk [vmem:[%s336 + $0x8] sm:$0xff] %vm2101, %v2026
      %2104 = vst.msk [vmem:[%s336 + $0x10] sm:$0xff] %vm2101, %v2027
      %2105 = vst.msk [vmem:[%s336 + $0x18] sm:$0xff] %vm2101, %v2028
      %2106 = vst.msk [vmem:[%s336 + $0x20] sm:$0xff] %vm2101, %v2029
      %2107 = vst.msk [vmem:[%s336 + $0x28] sm:$0xff] %vm2101, %v2030
      %2108 = vst.msk [vmem:[%s336 + $0x30] sm:$0xff] %vm2101, %v2031
      %2109 = vst.msk [vmem:[%s336 + $0x38] sm:$0xff] %vm2101, %v2032
      %2110 = vst.msk [vmem:[%s336 + $0x40] sm:$0xff] %vm2101, %v2097
      %2111 = vst.msk [vmem:[%s336 + $0x48] sm:$0xff] %vm2101, %v2098
      %2112 = vst.msk [vmem:[%s336 + $0x50] sm:$0xff] %vm2101, %v2099
      %2113 = vst.msk [vmem:[%s336 + $0x58] sm:$0xff] %vm2101, %v2100
      %v2114 = vrot.slane %v340, 6
      %v2115 = vrot.slane %v2114, 4
      %v2116 = vrot.slane %v342, 6
      %v2117 = vrot.slane %v2116, 4
      %v2118 = vrot.slane %v344, 6
      %v2119 = vrot.slane %v2118, 4
      %v2120 = vrot.slane %v346, 6
      %v2121 = vrot.slane %v2120, 4
      %v2122 = vrot.slane %v348, 6
      %v2123 = vrot.slane %v2122, 4
      %v2124 = vrot.slane %v350, 6
      %v2125 = vrot.slane %v2124, 4
      %v2126 = vrot.slane %v352, 6
      %v2127 = vrot.slane %v2126, 4
      %v2128 = vrot.slane %v354, 6
      %v2129 = vrot.slane %v2128, 4
      %v2138 = vmax.bf16 %v340, %v2115
      %v2139 = vmax.bf16 %v342, %v2117
      %v2140 = vmax.bf16 %v344, %v2119
      %v2141 = vmax.bf16 %v346, %v2121
      %v2142 = vmax.bf16 %v348, %v2123
      %v2143 = vmax.bf16 %v350, %v2125
      %v2144 = vmax.bf16 %v352, %v2127
      %v2145 = vmax.bf16 %v354, %v2129
      %v2146 = vrot.slane %v341, 6
      %v2147 = vrot.slane %v2146, 4
      %v2148 = vrot.slane %v343, 6
      %v2149 = vrot.slane %v2148, 4
      %v2150 = vrot.slane %v345, 6
      %v2151 = vrot.slane %v2150, 4
      %v2152 = vrot.slane %v347, 6
      %v2153 = vrot.slane %v2152, 4
      %v2154 = vrot.slane %v349, 6
      %v2155 = vrot.slane %v2154, 4
      %v2156 = vrot.slane %v351, 6
      %v2157 = vrot.slane %v2156, 4
      %v2158 = vrot.slane %v353, 6
      %v2159 = vrot.slane %v2158, 4
      %v2160 = vrot.slane %v355, 6
      %v2161 = vrot.slane %v2160, 4
      %v2170 = vmax.bf16 %v341, %v2147
      %v2171 = vmax.bf16 %v343, %v2149
      %v2172 = vmax.bf16 %v345, %v2151
      %v2173 = vmax.bf16 %v347, %v2153
      %v2174 = vmax.bf16 %v349, %v2155
      %v2175 = vmax.bf16 %v351, %v2157
      %v2176 = vmax.bf16 %v353, %v2159
      %v2177 = vmax.bf16 %v355, %v2161
      %v2178 = vmax.bf16 %v2138, %v2170
      %v2179 = vmax.bf16 %v2139, %v2171
      %v2180 = vmax.bf16 %v2140, %v2172
      %v2181 = vmax.bf16 %v2141, %v2173
      %v2182 = vmax.bf16 %v2142, %v2174
      %v2183 = vmax.bf16 %v2143, %v2175
      %v2184 = vmax.bf16 %v2144, %v2176
      %v2185 = vmax.bf16 %v2145, %v2177
      %v2186 = vunpack.c.l.bf16 %v2178
      %v2187 = vunpack.c.l.bf16 %v2179
      %v2188 = vunpack.c.l.bf16 %v2180
      %v2189 = vunpack.c.l.bf16 %v2181
      %v2190 = vunpack.c.l.bf16 %v2182
      %v2191 = vunpack.c.l.bf16 %v2183
      %v2192 = vunpack.c.l.bf16 %v2184
      %v2193 = vunpack.c.l.bf16 %v2185
      %v2194 = vrot.slane %v1837, 4
      %v2196 = vmul.f32 %v2186, %v2194
      %v2197 = vmul.f32 %v2187, %v2194
      %v2198 = vmul.f32 %v2188, %v2194
      %v2199 = vmul.f32 %v2189, %v2194
      %v2200 = vmul.f32 %v2190, %v2194
      %v2201 = vmul.f32 %v2191, %v2194
      %v2202 = vmul.f32 %v2192, %v2194
      %v2203 = vmul.f32 %v2193, %v2194
      %v2204 = vrot.slane %v1863, 4
      %v2206 = vadd.f32 %v2196, %v2204
      %v2207 = vadd.f32 %v2197, %v2204
      %v2208 = vadd.f32 %v2198, %v2204
      %v2209 = vadd.f32 %v2199, %v2204
      %v2210 = vadd.f32 %v2200, %v2204
      %v2211 = vadd.f32 %v2201, %v2204
      %v2212 = vadd.f32 %v2202, %v2204
      %v2213 = vadd.f32 %v2203, %v2204
      %v2214 = vmax.f32 %v2206, 0.0
      %v2215 = vmax.f32 %v2207, 0.0
      %v2216 = vmax.f32 %v2208, 0.0
      %v2217 = vmax.f32 %v2209, 0.0
      %v2218 = vmax.f32 %v2210, 0.0
      %v2219 = vmax.f32 %v2211, 0.0
      %v2220 = vmax.f32 %v2212, 0.0
      %v2221 = vmax.f32 %v2213, 0.0
      %2230 = vrot.lane.b32.xlu0 %v2214, 127
      %v2231 = vpop.permute.xlu0 %2230
      %2232 = vrot.lane.b32.xlu0 %v2215, 127
      %v2233 = vpop.permute.xlu0 %2232
      %2234 = vrot.lane.b32.xlu0 %v2216, 127
      %v2235 = vpop.permute.xlu0 %2234
      %2236 = vrot.lane.b32.xlu0 %v2217, 127
      %v2237 = vpop.permute.xlu0 %2236
      %2238 = vrot.lane.b32.xlu0 %v2218, 127
      %v2239 = vpop.permute.xlu0 %2238
      %2240 = vrot.lane.b32.xlu0 %v2219, 127
      %v2241 = vpop.permute.xlu0 %2240
      %2242 = vrot.lane.b32.xlu0 %v2220, 127
      %v2243 = vpop.permute.xlu0 %2242
      %2244 = vrot.lane.b32.xlu0 %v2221, 127
      %v2245 = vpop.permute.xlu0 %2244
      %v2254 = vcombine.low %v2231, %v2235
      %v2256 = vunpack.c.l.s4 1983009808
      %v2257 = vunpack.c.0.s8 %v2256
      %v2258 = vlaneseq
      %v2259 = vshrl.u32 %v2258, 7
      %v2260 = vsub.s32 %v2257, %v2259
      %v2261 = vrot.slane %v2254, %v2260
      %v2262 = vcombine.low %v2233, %v2237
      %v2264 = vunpack.c.l.s4 1983009808
      %v2265 = vunpack.c.0.s8 %v2264
      %v2266 = vlaneseq
      %v2267 = vshrl.u32 %v2266, 7
      %v2268 = vsub.s32 %v2265, %v2267
      %v2269 = vrot.slane %v2262, %v2268
      %v2270 = vcombine.low %v2239, %v2243
      %v2272 = vunpack.c.l.s4 1983009808
      %v2273 = vunpack.c.0.s8 %v2272
      %v2274 = vlaneseq
      %v2275 = vshrl.u32 %v2274, 7
      %v2276 = vsub.s32 %v2273, %v2275
      %v2277 = vrot.slane %v2270, %v2276
      %v2278 = vcombine.low %v2241, %v2245
      %v2280 = vunpack.c.l.s4 1983009808
      %v2281 = vunpack.c.0.s8 %v2280
      %v2282 = vlaneseq
      %v2283 = vshrl.u32 %v2282, 7
      %v2284 = vsub.s32 %v2281, %v2283
      %v2285 = vrot.slane %v2278, %v2284
      %v2286 = vcombine.low %v2261, %v2269
      %v2287 = vcombine.high %v2261, %v2269
      %v2289 = vunpack.c.l.s4 1934713408
      %v2290 = vunpack.c.0.s8 %v2289
      %v2291 = vlaneseq
      %v2292 = vshrl.u32 %v2291, 7
      %v2293 = vsub.s32 %v2290, %v2292
      %v2294 = vrot.slane %v2286, %v2293
      %v2296 = vunpack.c.l.s4 1934713408
      %v2297 = vunpack.c.0.s8 %v2296
      %v2298 = vlaneseq
      %v2299 = vshrl.u32 %v2298, 7
      %v2300 = vsub.s32 %v2297, %v2299
      %v2301 = vrot.slane %v2287, %v2300
      %v2302 = vcombine.low %v2277, %v2285
      %v2303 = vcombine.high %v2277, %v2285
      %v2305 = vunpack.c.l.s4 1934713408
      %v2306 = vunpack.c.0.s8 %v2305
      %v2307 = vlaneseq
      %v2308 = vshrl.u32 %v2307, 7
      %v2309 = vsub.s32 %v2306, %v2308
      %v2310 = vrot.slane %v2302, %v2309
      %v2312 = vunpack.c.l.s4 1934713408
      %v2313 = vunpack.c.0.s8 %v2312
      %v2314 = vlaneseq
      %v2315 = vshrl.u32 %v2314, 7
      %v2316 = vsub.s32 %v2313, %v2315
      %v2317 = vrot.slane %v2303, %v2316
      %v2318 = vcombine.low %v2294, %v2310
      %v2319 = vcombine.high %v2294, %v2310
      %v2320 = vcombine.low %v2301, %v2317
      %v2321 = vcombine.high %v2301, %v2317
      %s2322 = scalar_lea.vmem %s336, 96
      %2323 = vst.msk [vmem:[%s2322] sm:$0xff] %vm2101, %v2318
      %2324 = vst.msk [vmem:[%s2322 + $0x8] sm:$0xff] %vm2101, %v2319
      %2325 = vst.msk [vmem:[%s2322 + $0x10] sm:$0xff] %vm2101, %v2320
      %2326 = vst.msk [vmem:[%s2322 + $0x18] sm:$0xff] %vm2101, %v2321
      %p2327 = scmp.lt.s32.totalorder %s20, 1
      %s2328 = scalar_select %p2327, %s20, 1
      %p2329 = scmp.lt.s32.totalorder %s21, 0
      %s2330 = scalar_select %p2329, %s21, 0
      %s2331 = smul.addr %s2328, 16
      %s2332 = sadd.s32 %s2330, %s2331
      %s2333 = smul.addr %s2332, 8
      %s2334 = scalar_lea.vmem %s5, %s2333
      // Predicated region
      $region41: #{downsampler_block.1} parent=39 // pred_check
        %p2335 = pneg %p171
      $region42: #{downsampler_block.1} parent=39 // pred_check_branch
        %2337 = sbr.rel (%p2335) target = $region44
      $region43: #{downsampler_block.1} parent=39 // pred_region
        _
      $region44: #{downsampler_block.1} parent=39 // pred_fallthru
        _
    $region40: #{downsampler_block.1} parent=5 // pred_fallthru
      _
    %p2338 = scmp.le.s32.totalorder 2, %s11
    // Predicated region
    $region45: #{downsampler_block.1} parent=5 // pred_check
      %p2339 = pneg %p2338
    $region46: #{downsampler_block.1} parent=5 // pred_check_branch
      %2341 = sbr.rel (%p2339) target = $region48
    $region47: #{downsampler_block.1} parent=5 // pred_region
      %s2342 = ssub.s32 %s11, 2
      // Predicated region
      $region49: #{downsampler_block.1} parent=47 // pred_check
        %p2343 = pneg %p177
      $region50: #{downsampler_block.1} parent=47 // pred_check_branch
        %2345 = sbr.rel (%p2343) target = $region52
      $region51: #{downsampler_block.1} parent=47 // pred_region
        %p2346 = scmp.lt.s32.totalorder %s22, 1
        %s2347 = scalar_select %p2346, %s22, 1
        %p2348 = scmp.lt.s32.totalorder %s23, 0
        %s2349 = scalar_select %p2348, %s23, 0
        %s2350 = smul.addr %s2347, 16
        %s2351 = sadd.s32 %s2349, %s2350
        %s2352 = smul.addr %s2351, 8
        %s2353 = scalar_lea.vmem %s5, %s2352
      $region52: #{downsampler_block.1} parent=47 // pred_fallthru
        _
    $region48: #{downsampler_block.1} parent=5 // pred_fallthru
      _
  $region6: #{downsampler_block.1} parent=0 // loop_footer
    %s15 = sadd.s32 1, %s11
  $region7: #{downsampler_block.1} parent=0 // loop_footer_branch
    %10 = sbr.rel target = $region3
  $region8: #{downsampler_block.1} parent=0 // loop_exit
    _

</llo_original>
